<compile_context>
chip_gen: v7x
topology: tpu7x:2x2x1
jax: 0.10.0
libtpu: 0.0.40
codegen_flags: <defaults>
</compile_context>

<pallas_src>
import jax
import jax.numpy as jnp
from jax import lax
from jax.experimental import pallas as pl
from jax.experimental.pallas import tpu as pltpu


_TM = 512   # row tile; sweep 512 vs 1024 per-generation (v6e gains a bit at 1024)


# ---------------------------------------------------------------------------
# helpers
# ---------------------------------------------------------------------------
def _round_up(x, m):
    return ((x + m - 1) // m) * m


def _row_tiling(rows):
    """(tile_rows, num_tiles, padded_rows), minimizing pad waste.

    When more than one tile is needed, the tile height must be a multiple of
    128 so the [1, tm] int32 segment-id blocks stay lane-aligned.
    """
    if rows <= _TM:
        tm = max(_round_up(rows, 8), 8)
        return tm, 1, tm
    ntiles = -(-rows // _TM)
    tm = _round_up(-(-rows // ntiles), 128)
    return tm, ntiles, tm * ntiles


def _pad_rows(a, rows):
    return jnp.pad(a, ((0, rows - a.shape[0]), (0, 0)))


def _pad_ids(ids, rows, fill):
    return jnp.pad(ids.astype(jnp.int32), (0, rows - ids.shape[0]),
                   constant_values=fill)


def _vmem_limit_bytes():
    try:
        cap = int(pltpu.get_tpu_info().vmem_capacity_bytes)
    except Exception:
        cap = 64 * 1024 * 1024
    # ~3/4 of physical VMEM: v7x (64 MiB) -> 48 MiB; v5e/v6e (128 MiB) -> 96 MiB.
    return int(min(cap * 3 // 4, 96 * 1024 * 1024))


# ---------------------------------------------------------------------------
# Kernel 1: edge MLP + dst-sum aggregation + per-graph edge sum (fused)
# ---------------------------------------------------------------------------
def _edge_kernel(edge_in_ref, egc_ref, dstr_ref, egr_ref,
                 gw1u_ref, w1_ref, b1_ref, w2_ref, b2_ref,
                 e_ref, h_ref, ec_ref):
    @pl.when(pl.program_id(0) == 0)
    def _init():
        h_ref[...] = jnp.zeros_like(h_ref)
        ec_ref[...] = jnp.zeros_like(ec_ref)

    dtype = w1_ref.dtype
    tm = edge_in_ref.shape[0]
    n_seg = h_ref.shape[0]
    b_seg = ec_ref.shape[0]

    # fused gather of the global-feature contribution:
    #   u_e @ W1_u == onehot(edge_graph_id) @ (g_repr @ W1_u)
    oh_u = (egc_ref[...] ==
            lax.broadcasted_iota(jnp.int32, (tm, b_seg), 1)).astype(dtype)
    acc = jnp.dot(oh_u, gw1u_ref[...], preferred_element_type=jnp.float32)
    acc += jnp.dot(edge_in_ref[...], w1_ref[...],
                   preferred_element_type=jnp.float32)
    hid = jnp.maximum(acc + b1_ref[...], 0.0)
    y = jnp.dot(hid.astype(dtype), w2_ref[...],
                preferred_element_type=jnp.float32) + b2_ref[...]
    e_ref[...] = y.astype(e_ref.dtype)

    # fused segment sums (f32 accumulation; padded rows carry id == -1)
    oh_dst = (dstr_ref[...] ==
              lax.broadcasted_iota(jnp.int32, (n_seg, tm), 0)).astype(jnp.float32)
    h_ref[...] += jnp.dot(oh_dst, y, preferred_element_type=jnp.float32)
    oh_eg = (egr_ref[...] ==
             lax.broadcasted_iota(jnp.int32, (b_seg, tm), 0)).astype(jnp.float32)
    ec_ref[...] += jnp.dot(oh_eg, y, preferred_element_type=jnp.float32)


def _edge_stage(edge_in, egid_col, dst_row, egid_row, gw1u, w1, b1, w2, b2,
                *, n_pad, b_pad, tm, ntiles, dtype):
    E_p, k_x = edge_in.shape
    hidden = w1.shape[1]
    dout = w2.shape[1]
    row = lambda d: pl.BlockSpec((tm, d), lambda i: (i, 0))
    const = lambda s: pl.BlockSpec(s, lambda i: (0, 0))
    in_specs = [
        row(k_x),                                   # edge_in = [e, x_src, x_dst]
        row(1),                                     # edge_graph_id (column)
        pl.BlockSpec((1, tm), lambda i: (0, i)),    # dst (row layout, pad = -1)
        pl.BlockSpec((1, tm), lambda i: (0, i)),    # edge_graph_id (row, pad = -1)
        const((b_pad, hidden)),                     # g_repr @ W1_u
        const((k_x, hidden)), const((1, hidden)),   # W1 (non-u rows), b1
        const((hidden, dout)), const((1, dout)),    # W2, b2
    ]
    out_specs = [
        row(dout),                                  # e_new (row-tiled)
        const((n_pad, dout)),                       # h       (resident accumulator)
        const((b_pad, dout)),                       # e_comb  (resident accumulator)
    ]
    out_shape = [
        jax.ShapeDtypeStruct((E_p, dout), dtype),
        jax.ShapeDtypeStruct((n_pad, dout), jnp.float32),
        jax.ShapeDtypeStruct((b_pad, dout), jnp.float32),
    ]
    return pl.pallas_call(
        _edge_kernel, out_shape=out_shape, grid=(ntiles,),
        in_specs=in_specs, out_specs=out_specs,
        compiler_params=pltpu.CompilerParams(
            dimension_semantics=("arbitrary",),     # resident accumulators
            vmem_limit_bytes=_vmem_limit_bytes()),
    )(edge_in, egid_col, dst_row, egid_row, gw1u, w1, b1, w2, b2)


# ---------------------------------------------------------------------------
# Kernel 2: node MLP + per-graph node sum + global MLP tail (fused)
# ---------------------------------------------------------------------------
def _node_kernel(nf_ref, hag_ref, ngc_ref, ngr_ref,
                 gw1u_ref, w1x_ref, w1h_ref, b1_ref, w2_ref, b2_ref,
                 ecomb_ref, g_ref,
                 w1un_ref, w1ue_ref, w1ug_ref, b1u_ref, w2u_ref, b2u_ref,
                 n_ref, nc_ref, u_ref):
    i = pl.program_id(0)

    @pl.when(i == 0)
    def _init():
        nc_ref[...] = jnp.zeros_like(nc_ref)
        u_ref[...] = jnp.zeros_like(u_ref)

    dtype = w1x_ref.dtype
    tm = nf_ref.shape[0]
    b_seg = nc_ref.shape[0]

    oh_u = (ngc_ref[...] ==
            lax.broadcasted_iota(jnp.int32, (tm, b_seg), 1)).astype(dtype)
    acc = jnp.dot(oh_u, gw1u_ref[...], preferred_element_type=jnp.float32)
    acc += jnp.dot(nf_ref[...], w1x_ref[...], preferred_element_type=jnp.float32)
    acc += jnp.dot(hag_ref[...].astype(dtype), w1h_ref[...],
                   preferred_element_type=jnp.float32)
    hid = jnp.maximum(acc + b1_ref[...], 0.0)
    y = jnp.dot(hid.astype(dtype), w2_ref[...],
                preferred_element_type=jnp.float32) + b2_ref[...]
    n_ref[...] = y.astype(n_ref.dtype)

    oh_ng = (ngr_ref[...] ==
             lax.broadcasted_iota(jnp.int32, (b_seg, tm), 0)).astype(jnp.float32)
    nc_ref[...] += jnp.dot(oh_ng, y, preferred_element_type=jnp.float32)

    # global MLP on the last row tile: u_new = fc_u2(relu(fc_u([n_comb, e_comb, g])))
    @pl.when(i == pl.num_programs(0) - 1)
    def _u_tail():
        accu = jnp.dot(nc_ref[...].astype(dtype), w1un_ref[...],
                       preferred_element_type=jnp.float32)
        accu += jnp.dot(ecomb_ref[...].astype(dtype), w1ue_ref[...],
                        preferred_element_type=jnp.float32)
        accu += jnp.dot(g_ref[...], w1ug_ref[...],
                        preferred_element_type=jnp.float32)
        hidu = jnp.maximum(accu + b1u_ref[...], 0.0)
        u_ref[...] = (jnp.dot(hidu.astype(dtype), w2u_ref[...],
                              preferred_element_type=jnp.float32)
                      + b2u_ref[...]).astype(u_ref.dtype)


def _node_stage(nf, h_agg, ngid_col, ngid_row, gw1u_n,
                w1x, w1h, b1, w2, b2,
                e_comb, g_pad, w1un, w1ue, w1ug, b1u, w2u, b2u,
                *, b_pad, tm, ntiles, dtype):
    N_p, dn = nf.shape
    hidden = w1x.shape[1]
    dout = w2.shape[1]
    du = g_pad.shape[1]
    row = lambda d: pl.BlockSpec((tm, d), lambda i: (i, 0))
    const = lambda s: pl.BlockSpec(s, lambda i: (0, 0))
    in_specs = [
        row(dn),                                    # node_feat
        row(dout),                                  # h (aggregated edges, f32)
        row(1),                                     # node_graph_id (column)
        pl.BlockSpec((1, tm), lambda i: (0, i)),    # node_graph_id (row, pad = -1)
        const((b_pad, hidden)),                     # g_repr @ W1n_u
        const((dn, hidden)), const((dout, hidden)), const((1, hidden)),
        const((hidden, dout)), const((1, dout)),
        const((b_pad, dout)),                       # e_comb (for global MLP)
        const((b_pad, du)),                         # g_repr
        const((dout, hidden)), const((dout, hidden)), const((du, hidden)),
        const((1, hidden)), const((hidden, dout)), const((1, dout)),
    ]
    out_specs = [
        row(dout),                                  # n_new (row-tiled)
        const((b_pad, dout)),                       # n_comb (resident accumulator)
        const((b_pad, dout)),                       # u_new  (resident)
    ]
    out_shape = [
        jax.ShapeDtypeStruct((N_p, dout), dtype),
        jax.ShapeDtypeStruct((b_pad, dout), jnp.float32),
        jax.ShapeDtypeStruct((b_pad, dout), jnp.float32),
    ]
    return pl.pallas_call(
        _node_kernel, out_shape=out_shape, grid=(ntiles,),
        in_specs=in_specs, out_specs=out_specs,
        compiler_params=pltpu.CompilerParams(
            dimension_semantics=("arbitrary",),
            vmem_limit_bytes=_vmem_limit_bytes()),
    )(nf, h_agg, ngid_col, ngid_row, gw1u_n, w1x, w1h, b1, w2, b2,
      e_comb, g_pad, w1un, w1ue, w1ug, b1u, w2u, b2u)


# ---------------------------------------------------------------------------
# RFMBlock forward
# ---------------------------------------------------------------------------
def rfm_block_forward(params, edge_feat, node_feat, g_repr,
                      src, dst, edge_graph_id, node_graph_id,
                      *, dtype=jnp.bfloat16):
    E, de = edge_feat.shape
    N, dn = node_feat.shape
    B, du = g_repr.shape

    w1e, b1e, w2e, b2e = params['edge']
    w1n, b1n, w2n, b2n = params['node']
    w1u, b1u, w2u, b2u = params['u']
    hidden = w1e.shape[1]
    dout = w2e.shape[1]

    tm_e, nt_e, E_p = _row_tiling(E)
    tm_n, nt_n, N_p = _row_tiling(N)
    B_p = _round_up(B, 8)

    # ---- split W1 by input part, cast to compute dtype ----
    k_xe = de + 2 * dn
    w1e_x = w1e[:k_xe].astype(dtype)
    w1e_u = w1e[k_xe:]                          # u rows (folded into table below)
    w1n_x = w1n[:dn].astype(dtype)
    w1n_h = w1n[dn:dn + dout].astype(dtype)
    w1n_u = w1n[dn + dout:]
    w1u_n = w1u[:dout].astype(dtype)
    w1u_e = w1u[dout:2 * dout].astype(dtype)
    w1u_g = w1u[2 * dout:].astype(dtype)

    b1e_r = b1e.reshape(1, -1).astype(jnp.float32)
    b2e_r = b2e.reshape(1, -1).astype(jnp.float32)
    b1n_r = b1n.reshape(1, -1).astype(jnp.float32)
    b2n_r = b2n.reshape(1, -1).astype(jnp.float32)
    b1u_r = b1u.reshape(1, -1).astype(jnp.float32)
    b2u_r = b2u.reshape(1, -1).astype(jnp.float32)

    # fold the per-graph global-feature gather into premultiplied tables:
    #   u[row] @ W1_u == onehot(graph_id[row]) @ (g_repr @ W1_u)
    g_pad32 = _pad_rows(g_repr, B_p)
    hi = lax.Precision.HIGHEST
    gw1u_e = jnp.dot(g_pad32, w1e_u, precision=hi).astype(dtype)
    gw1u_n = jnp.dot(g_pad32, w1n_u, precision=hi).astype(dtype)
    g_pad = g_pad32.astype(dtype)

    # ---- glue gathers / row padding (plain JAX; same HBM bytes either way) ----
    node_c = node_feat.astype(dtype)
    src_g = _pad_ids(src, E_p, 0)
    dst_g = _pad_ids(dst, E_p, 0)
    edge_in = jnp.concatenate(
        [_pad_rows(edge_feat, E_p).astype(dtype), node_c[src_g], node_c[dst_g]],
        axis=-1)                                            # [E_p, de + 2*dn]
    egid_col = _pad_ids(edge_graph_id, E_p, 0).reshape(E_p, 1)
    dst_row = _pad_ids(dst, E_p, -1).reshape(1, E_p)        # -1 = padded row
    egid_row = _pad_ids(edge_graph_id, E_p, -1).reshape(1, E_p)

    # ---- stage 1: edge MLP + fused (dst, per-graph) segment sums ----
    e_new, h_agg, e_comb = _edge_stage(
        edge_in, egid_col, dst_row, egid_row, gw1u_e,
        w1e_x, b1e_r, w2e.astype(dtype), b2e_r,
        n_pad=N_p, b_pad=B_p, tm=tm_e, ntiles=nt_e, dtype=dtype)

    # ---- stage 2: node MLP + fused per-graph node sum + global MLP tail ----
    nf_p = _pad_rows(node_feat, N_p).astype(dtype)
    ngid_col = _pad_ids(node_graph_id, N_p, 0).reshape(N_p, 1)
    ngid_row = _pad_ids(node_graph_id, N_p, -1).reshape(1, N_p)
    n_new, _n_comb, u_new = _node_stage(
        nf_p, h_agg, ngid_col, ngid_row, gw1u_n,
        w1n_x, w1n_h, b1n_r, w2n.astype(dtype), b2n_r,
        e_comb, g_pad,
        w1u_n, w1u_e, w1u_g, b1u_r, w2u.astype(dtype), b2u_r,
        b_pad=B_p, tm=tm_n, ntiles=nt_n, dtype=dtype)

    return (e_new[:E].astype(jnp.float32),
            n_new[:N].astype(jnp.float32),
            u_new[:B].astype(jnp.float32))


# ---------------------------------------------------------------------------
# Pure-JAX reference (for correctness check)
# ---------------------------------------------------------------------------
def rfm_block_reference(params, edge_feat, node_feat, g_repr,
                        src, dst, edge_graph_id, node_graph_id):
    def mlp(x, w1, b1, w2, b2):
        return jnp.maximum(x @ w1 + b1, 0.0) @ w2 + b2

    N = node_feat.shape[0]
    B = g_repr.shape[0]
    u_e = g_repr[edge_graph_id]
    u_n = g_repr[node_graph_id]
    e_new = mlp(jnp.concatenate(
        [edge_feat, node_feat[src], node_feat[dst], u_e], -1), *params['edge'])
    h = jax.ops.segment_sum(e_new, dst, num_segments=N)
    n_new = mlp(jnp.concatenate([node_feat, h, u_n], -1), *params['node'])
    e_comb = jax.ops.segment_sum(e_new, edge_graph_id, num_segments=B)
    n_comb = jax.ops.segment_sum(n_new, node_graph_id, num_segments=B)
    u_new = mlp(jnp.concatenate([n_comb, e_comb, g_repr], -1), *params['u'])
    return e_new, n_new, u_new


def linear_params(key, din, dout):
    kw, kb = jax.random.split(key)
    bound = 1.0 / jnp.sqrt(jnp.float32(din))
    w = jax.random.uniform(kw, (din, dout), jnp.float32, -bound, bound)
    b = jax.random.uniform(kb, (dout,), jnp.float32, -bound, bound)
    return w, b


# ---------------------------------------------------------------------------
if __name__ == "__main__":
    key = jax.random.PRNGKey(0)

    # small, forward-consistent dims
    node_dim, edge_dim, u_dim = 6, 5, 7
    hidden_dim, dim_out = 32, 16
    dim_in_edge = edge_dim + 2 * node_dim + u_dim    # edge_feat, src, dst, u
    dim_in_node = node_dim + dim_out + u_dim         # node_feat, h, u
    dim_in_u = 2 * dim_out + u_dim                   # n_comb, e_comb, g_repr

    (k_e1, k_e2, k_n1, k_n2, k_u1, k_u2,
     k_ef, k_nf, k_g) = jax.random.split(key, 9)

    params = {
        'edge': (*linear_params(k_e1, dim_in_edge, hidden_dim),
                 *linear_params(k_e2, hidden_dim, dim_out)),
        'node': (*linear_params(k_n1, dim_in_node, hidden_dim),
                 *linear_params(k_n2, hidden_dim, dim_out)),
        'u':    (*linear_params(k_u1, dim_in_u, hidden_dim),
                 *linear_params(k_u2, hidden_dim, dim_out)),
    }

    # batched graph: graph 0 has 3 nodes / 4 edges, graph 1 has 5 nodes / 4 edges
    src = jnp.array([0, 1, 2, 0, 3, 4, 5, 6], dtype=jnp.int32)
    dst = jnp.array([1, 2, 0, 2, 4, 5, 6, 7], dtype=jnp.int32)
    node_graph_id = jnp.array([0, 0, 0, 1, 1, 1, 1, 1], dtype=jnp.int32)
    edge_graph_id = jnp.array([0, 0, 0, 0, 1, 1, 1, 1], dtype=jnp.int32)
    E, N, B = src.shape[0], node_graph_id.shape[0], 2

    edge_feat = jax.random.normal(k_ef, (E, edge_dim), jnp.float32)
    node_feat = jax.random.normal(k_nf, (N, node_dim), jnp.float32)
    g_repr = jax.random.normal(k_g, (B, u_dim), jnp.float32)

    fwd = jax.jit(rfm_block_forward, static_argnames=('dtype',))

    e_ref, n_ref, u_ref = rfm_block_reference(
        params, edge_feat, node_feat, g_repr,
        src, dst, edge_graph_id, node_graph_id)

    # ---- f32 path: tight-ish correctness check (default MXU precision) ----
    out32 = fwd(params, edge_feat, node_feat, g_repr,
                src, dst, edge_graph_id, node_graph_id, dtype=jnp.float32)
    jax.block_until_ready(out32)
    e32, n32, u32 = out32
    assert e32.shape == (E, dim_out) and n32.shape == (N, dim_out) \
        and u32.shape == (B, dim_out)
    assert jnp.allclose(e32, e_ref, atol=2e-3, rtol=2e-3)
    assert jnp.allclose(n32, n_ref, atol=2e-3, rtol=2e-3)
    assert jnp.allclose(u32, u_ref, atol=2e-3, rtol=2e-3)

    # ---- bf16 path (perf configuration for v5e/v6e/v7x): loose check ----
    out16 = fwd(params, edge_feat, node_feat, g_repr,
                src, dst, edge_graph_id, node_graph_id, dtype=jnp.bfloat16)
    jax.block_until_ready(out16)
    e16, n16, u16 = out16
    assert jnp.allclose(e16, e_ref, atol=3e-1, rtol=5e-2)
    assert jnp.allclose(n16, n_ref, atol=3e-1, rtol=5e-2)
    assert jnp.allclose(u16, u_ref, atol=3e-1, rtol=5e-2)

    print("KERNEL_OK")
</pallas_src>

<mosaic_0001>
module attributes {stable_mosaic.version = 11 : i64} {
  func.func @_edge_kernel(%arg0: i32, %arg1: memref<8x17xf32, #tpu.memory_space<vmem>>, %arg2: memref<8x1xi32, #tpu.memory_space<vmem>>, %arg3: memref<1x8xi32, #tpu.memory_space<vmem>>, %arg4: memref<1x8xi32, #tpu.memory_space<vmem>>, %arg5: memref<8x32xf32, #tpu.memory_space<vmem>>, %arg6: memref<17x32xf32, #tpu.memory_space<vmem>>, %arg7: memref<1x32xf32, #tpu.memory_space<vmem>>, %arg8: memref<32x16xf32, #tpu.memory_space<vmem>>, %arg9: memref<1x16xf32, #tpu.memory_space<vmem>>, %arg10: memref<8x16xf32, #tpu.memory_space<vmem>>, %arg11: memref<8x16xf32, #tpu.memory_space<vmem>>, %arg12: memref<8x16xf32, #tpu.memory_space<vmem>>) attributes {dimension_semantics = [#tpu.dimension_semantics<arbitrary>], iteration_bounds = array<i64: 1>, scalar_prefetch = 0 : i64, scratch_operands = 0 : i64, tpu.core_type = #tpu.core_type<tc>, window_params = [{transform_indices = @transform_0, window_bounds = array<i64: 8, 17>}, {transform_indices = @transform_1, window_bounds = array<i64: 8, 1>}, {transform_indices = @transform_2, window_bounds = array<i64: 1, 8>}, {transform_indices = @transform_3, window_bounds = array<i64: 1, 8>}, {pipeline_mode = #tpu.pipeline_mode<synchronous>, transform_indices = @transform_4, window_bounds = array<i64: 8, 32>}, {pipeline_mode = #tpu.pipeline_mode<synchronous>, transform_indices = @transform_5, window_bounds = array<i64: 17, 32>}, {pipeline_mode = #tpu.pipeline_mode<synchronous>, transform_indices = @transform_6, window_bounds = array<i64: 1, 32>}, {pipeline_mode = #tpu.pipeline_mode<synchronous>, transform_indices = @transform_7, window_bounds = array<i64: 32, 16>}, {pipeline_mode = #tpu.pipeline_mode<synchronous>, transform_indices = @transform_8, window_bounds = array<i64: 1, 16>}, {transform_indices = @transform_9, window_bounds = array<i64: 8, 16>}, {pipeline_mode = #tpu.pipeline_mode<synchronous>, transform_indices = @transform_10, window_bounds = array<i64: 8, 16>}, {pipeline_mode = #tpu.pipeline_mode<synchronous>, transform_indices = @transform_11, window_bounds = array<i64: 8, 16>}]} {
    %c0_i32 = arith.constant 0 : i32
    %0 = arith.cmpi eq, %arg0, %c0_i32 : i32
    %1 = arith.extui %0 : i1 to i32
    %c0_i32_0 = arith.constant 0 : i32
    %2 = arith.cmpi ne, %1, %c0_i32_0 : i32
    scf.if %2 {
      %cst_33 = arith.constant 0.000000e+00 : f32
      %46 = vector.broadcast %cst_33 : f32 to vector<8x16xf32>
      %c0_34 = arith.constant 0 : index
      %c0_35 = arith.constant 0 : index
      %47 = vector.load %arg11[%c0_34, %c0_35] : memref<8x16xf32, #tpu.memory_space<vmem>>, vector<8x16xf32>
      tpu.vector_store %arg11[%c0_34, %c0_35], %46 {strides = array<i32>} : memref<8x16xf32, #tpu.memory_space<vmem>>, vector<8x16xf32>,
      %cst_36 = arith.constant 0.000000e+00 : f32
      %48 = vector.broadcast %cst_36 : f32 to vector<8x16xf32>
      %c0_37 = arith.constant 0 : index
      %c0_38 = arith.constant 0 : index
      %49 = vector.load %arg12[%c0_37, %c0_38] : memref<8x16xf32, #tpu.memory_space<vmem>>, vector<8x16xf32>
      tpu.vector_store %arg12[%c0_37, %c0_38], %48 {strides = array<i32>} : memref<8x16xf32, #tpu.memory_space<vmem>>, vector<8x16xf32>,
    } else {
    }
    %c0 = arith.constant 0 : index
    %c0_1 = arith.constant 0 : index
    %3 = vector.load %arg2[%c0, %c0_1] : memref<8x1xi32, #tpu.memory_space<vmem>>, vector<8x1xi32>
    %4 = tpu.iota {dimensions = array<i32: 1>} : vector<8x8xi32>
    %5 = vector.broadcast %3 : vector<8x1xi32> to vector<8x8xi32>
    %6 = arith.cmpi eq, %5, %4 : vector<8x8xi32>
    %7 = arith.extui %6 : vector<8x8xi1> to vector<8x8xi32>
    %8 = arith.sitofp %7 : vector<8x8xi32> to vector<8x8xf32>
    %c0_2 = arith.constant 0 : index
    %c0_3 = arith.constant 0 : index
    %9 = vector.load %arg5[%c0_2, %c0_3] : memref<8x32xf32, #tpu.memory_space<vmem>>, vector<8x32xf32>
    %cst = arith.constant dense<0.000000e+00> : vector<8x32xf32>
    %10 = tpu.matmul %8, %9, %cst {dimension_numbers = #tpu.dot_dimension_numbers<[1], [0], [0], [1], [0, 0, 1, 1], [], []>} : vector<8x8xf32>, vector<8x32xf32>, vector<8x32xf32> -> vector<8x32xf32>
    %c0_4 = arith.constant 0 : index
    %c0_5 = arith.constant 0 : index
    %11 = vector.load %arg1[%c0_4, %c0_5] : memref<8x17xf32, #tpu.memory_space<vmem>>, vector<8x17xf32>
    %c0_6 = arith.constant 0 : index
    %c0_7 = arith.constant 0 : index
    %12 = vector.load %arg6[%c0_6, %c0_7] : memref<17x32xf32, #tpu.memory_space<vmem>>, vector<17x32xf32>
    %cst_8 = arith.constant dense<0.000000e+00> : vector<8x32xf32>
    %13 = tpu.matmul %11, %12, %cst_8 {dimension_numbers = #tpu.dot_dimension_numbers<[1], [0], [0], [1], [0, 0, 1, 1], [], []>} : vector<8x17xf32>, vector<17x32xf32>, vector<8x32xf32> -> vector<8x32xf32>
    %14 = arith.addf %10, %13 : vector<8x32xf32>
    %c0_9 = arith.constant 0 : index
    %c0_10 = arith.constant 0 : index
    %15 = vector.load %arg7[%c0_9, %c0_10] : memref<1x32xf32, #tpu.memory_space<vmem>>, vector<1x32xf32>
    %16 = vector.broadcast %15 : vector<1x32xf32> to vector<8x32xf32>
    %17 = arith.addf %14, %16 : vector<8x32xf32>
    %cst_11 = arith.constant 0.000000e+00 : f32
    %18 = vector.broadcast %cst_11 : f32 to vector<8x32xf32>
    %19 = arith.maximumf %17, %18 : vector<8x32xf32>
    %c0_12 = arith.constant 0 : index
    %c0_13 = arith.constant 0 : index
    %20 = vector.load %arg8[%c0_12, %c0_13] : memref<32x16xf32, #tpu.memory_space<vmem>>, vector<32x16xf32>
    %cst_14 = arith.constant dense<0.000000e+00> : vector<8x16xf32>
    %21 = tpu.matmul %19, %20, %cst_14 {dimension_numbers = #tpu.dot_dimension_numbers<[1], [0], [0], [1], [0, 0, 1, 1], [], []>} : vector<8x32xf32>, vector<32x16xf32>, vector<8x16xf32> -> vector<8x16xf32>
    %c0_15 = arith.constant 0 : index
    %c0_16 = arith.constant 0 : index
    %22 = vector.load %arg9[%c0_15, %c0_16] : memref<1x16xf32, #tpu.memory_space<vmem>>, vector<1x16xf32>
    %23 = vector.broadcast %22 : vector<1x16xf32> to vector<8x16xf32>
    %24 = arith.addf %21, %23 : vector<8x16xf32>
    %c0_17 = arith.constant 0 : index
    %c0_18 = arith.constant 0 : index
    %25 = vector.load %arg10[%c0_17, %c0_18] : memref<8x16xf32, #tpu.memory_space<vmem>>, vector<8x16xf32>
    tpu.vector_store %arg10[%c0_17, %c0_18], %24 {strides = array<i32>} : memref<8x16xf32, #tpu.memory_space<vmem>>, vector<8x16xf32>,
    %c0_19 = arith.constant 0 : index
    %c0_20 = arith.constant 0 : index
    %26 = vector.load %arg3[%c0_19, %c0_20] : memref<1x8xi32, #tpu.memory_space<vmem>>, vector<1x8xi32>
    %27 = tpu.iota {dimensions = array<i32: 0>} : vector<8x8xi32>
    %28 = vector.broadcast %26 : vector<1x8xi32> to vector<8x8xi32>
    %29 = arith.cmpi eq, %28, %27 : vector<8x8xi32>
    %30 = arith.extui %29 : vector<8x8xi1> to vector<8x8xi32>
    %31 = arith.sitofp %30 : vector<8x8xi32> to vector<8x8xf32>
    %c0_21 = arith.constant 0 : index
    %c0_22 = arith.constant 0 : index
    %32 = vector.load %arg11[%c0_21, %c0_22] : memref<8x16xf32, #tpu.memory_space<vmem>>, vector<8x16xf32>
    %cst_23 = arith.constant dense<0.000000e+00> : vector<8x16xf32>
    %33 = tpu.matmul %31, %24, %cst_23 {dimension_numbers = #tpu.dot_dimension_numbers<[1], [0], [0], [1], [0, 0, 1, 1], [], []>} : vector<8x8xf32>, vector<8x16xf32>, vector<8x16xf32> -> vector<8x16xf32>
    %34 = arith.addf %32, %33 : vector<8x16xf32>
    %c0_24 = arith.constant 0 : index
    %c0_25 = arith.constant 0 : index
    %35 = vector.load %arg11[%c0_24, %c0_25] : memref<8x16xf32, #tpu.memory_space<vmem>>, vector<8x16xf32>
    tpu.vector_store %arg11[%c0_24, %c0_25], %34 {strides = array<i32>} : memref<8x16xf32, #tpu.memory_space<vmem>>, vector<8x16xf32>,
    %c0_26 = arith.constant 0 : index
    %c0_27 = arith.constant 0 : index
    %36 = vector.load %arg4[%c0_26, %c0_27] : memref<1x8xi32, #tpu.memory_space<vmem>>, vector<1x8xi32>
    %37 = tpu.iota {dimensions = array<i32: 0>} : vector<8x8xi32>
    %38 = vector.broadcast %36 : vector<1x8xi32> to vector<8x8xi32>
    %39 = arith.cmpi eq, %38, %37 : vector<8x8xi32>
    %40 = arith.extui %39 : vector<8x8xi1> to vector<8x8xi32>
    %41 = arith.sitofp %40 : vector<8x8xi32> to vector<8x8xf32>
    %c0_28 = arith.constant 0 : index
    %c0_29 = arith.constant 0 : index
    %42 = vector.load %arg12[%c0_28, %c0_29] : memref<8x16xf32, #tpu.memory_space<vmem>>, vector<8x16xf32>
    %cst_30 = arith.constant dense<0.000000e+00> : vector<8x16xf32>
    %43 = tpu.matmul %41, %24, %cst_30 {dimension_numbers = #tpu.dot_dimension_numbers<[1], [0], [0], [1], [0, 0, 1, 1], [], []>} : vector<8x8xf32>, vector<8x16xf32>, vector<8x16xf32> -> vector<8x16xf32>
    %44 = arith.addf %42, %43 : vector<8x16xf32>
    %c0_31 = arith.constant 0 : index
    %c0_32 = arith.constant 0 : index
    %45 = vector.load %arg12[%c0_31, %c0_32] : memref<8x16xf32, #tpu.memory_space<vmem>>, vector<8x16xf32>
    tpu.vector_store %arg12[%c0_31, %c0_32], %44 {strides = array<i32>} : memref<8x16xf32, #tpu.memory_space<vmem>>, vector<8x16xf32>,
    return
  }
  func.func @transform_0(%arg0: i32) -> (i32, i32) {
    %c0_i32 = arith.constant 0 : i32
    %c0_i32_0 = arith.constant 0 : i32
    return %arg0, %c0_i32 : i32, i32
  }
  func.func @transform_1(%arg0: i32) -> (i32, i32) {
    %c0_i32 = arith.constant 0 : i32
    %c0_i32_0 = arith.constant 0 : i32
    return %arg0, %c0_i32 : i32, i32
  }
  func.func @transform_2(%arg0: i32) -> (i32, i32) {
    %c0_i32 = arith.constant 0 : i32
    %c0_i32_0 = arith.constant 0 : i32
    return %c0_i32, %arg0 : i32, i32
  }
  func.func @transform_3(%arg0: i32) -> (i32, i32) {
    %c0_i32 = arith.constant 0 : i32
    %c0_i32_0 = arith.constant 0 : i32
    return %c0_i32, %arg0 : i32, i32
  }
  func.func @transform_4(%arg0: i32) -> (i32, i32) {
    %c0_i32 = arith.constant 0 : i32
    %c0_i32_0 = arith.constant 0 : i32
    %c0_i32_1 = arith.constant 0 : i32
    return %c0_i32, %c0_i32_0 : i32, i32
  }
  func.func @transform_5(%arg0: i32) -> (i32, i32) {
    %c0_i32 = arith.constant 0 : i32
    %c0_i32_0 = arith.constant 0 : i32
    %c0_i32_1 = arith.constant 0 : i32
    return %c0_i32, %c0_i32_0 : i32, i32
  }
  func.func @transform_6(%arg0: i32) -> (i32, i32) {
    %c0_i32 = arith.constant 0 : i32
    %c0_i32_0 = arith.constant 0 : i32
    %c0_i32_1 = arith.constant 0 : i32
    return %c0_i32, %c0_i32_0 : i32, i32
  }
  func.func @transform_7(%arg0: i32) -> (i32, i32) {
    %c0_i32 = arith.constant 0 : i32
    %c0_i32_0 = arith.constant 0 : i32
    %c0_i32_1 = arith.constant 0 : i32
    return %c0_i32, %c0_i32_0 : i32, i32
  }
  func.func @transform_8(%arg0: i32) -> (i32, i32) {
    %c0_i32 = arith.constant 0 : i32
    %c0_i32_0 = arith.constant 0 : i32
    %c0_i32_1 = arith.constant 0 : i32
    return %c0_i32, %c0_i32_0 : i32, i32
  }
  func.func @transform_9(%arg0: i32) -> (i32, i32) {
    %c0_i32 = arith.constant 0 : i32
    %c0_i32_0 = arith.constant 0 : i32
    return %arg0, %c0_i32 : i32, i32
  }
  func.func @transform_10(%arg0: i32) -> (i32, i32) {
    %c0_i32 = arith.constant 0 : i32
    %c0_i32_0 = arith.constant 0 : i32
    %c0_i32_1 = arith.constant 0 : i32
    return %c0_i32, %c0_i32_0 : i32, i32
  }
  func.func @transform_11(%arg0: i32) -> (i32, i32) {
    %c0_i32 = arith.constant 0 : i32
    %c0_i32_0 = arith.constant 0 : i32
    %c0_i32_1 = arith.constant 0 : i32
    return %c0_i32, %c0_i32_0 : i32, i32
  }
}

module attributes {stable_mosaic.version = 11 : i64} {
  func.func @_node_kernel(%arg0: i32, %arg1: memref<8x6xf32, #tpu.memory_space<vmem>>, %arg2: memref<8x16xf32, #tpu.memory_space<vmem>>, %arg3: memref<8x1xi32, #tpu.memory_space<vmem>>, %arg4: memref<1x8xi32, #tpu.memory_space<vmem>>, %arg5: memref<8x32xf32, #tpu.memory_space<vmem>>, %arg6: memref<6x32xf32, #tpu.memory_space<vmem>>, %arg7: memref<16x32xf32, #tpu.memory_space<vmem>>, %arg8: memref<1x32xf32, #tpu.memory_space<vmem>>, %arg9: memref<32x16xf32, #tpu.memory_space<vmem>>, %arg10: memref<1x16xf32, #tpu.memory_space<vmem>>, %arg11: memref<8x16xf32, #tpu.memory_space<vmem>>, %arg12: memref<8x7xf32, #tpu.memory_space<vmem>>, %arg13: memref<16x32xf32, #tpu.memory_space<vmem>>, %arg14: memref<16x32xf32, #tpu.memory_space<vmem>>, %arg15: memref<7x32xf32, #tpu.memory_space<vmem>>, %arg16: memref<1x32xf32, #tpu.memory_space<vmem>>, %arg17: memref<32x16xf32, #tpu.memory_space<vmem>>, %arg18: memref<1x16xf32, #tpu.memory_space<vmem>>, %arg19: memref<8x16xf32, #tpu.memory_space<vmem>>, %arg20: memref<8x16xf32, #tpu.memory_space<vmem>>, %arg21: memref<8x16xf32, #tpu.memory_space<vmem>>) attributes {dimension_semantics = [#tpu.dimension_semantics<arbitrary>], iteration_bounds = array<i64: 1>, scalar_prefetch = 0 : i64, scratch_operands = 0 : i64, tpu.core_type = #tpu.core_type<tc>, window_params = [{transform_indices = @transform_0, window_bounds = array<i64: 8, 6>}, {transform_indices = @transform_1, window_bounds = array<i64: 8, 16>}, {transform_indices = @transform_2, window_bounds = array<i64: 8, 1>}, {transform_indices = @transform_3, window_bounds = array<i64: 1, 8>}, {pipeline_mode = #tpu.pipeline_mode<synchronous>, transform_indices = @transform_4, window_bounds = array<i64: 8, 32>}, {pipeline_mode = #tpu.pipeline_mode<synchronous>, transform_indices = @transform_5, window_bounds = array<i64: 6, 32>}, {pipeline_mode = #tpu.pipeline_mode<synchronous>, transform_indices = @transform_6, window_bounds = array<i64: 16, 32>}, {pipeline_mode = #tpu.pipeline_mode<synchronous>, transform_indices = @transform_7, window_bounds = array<i64: 1, 32>}, {pipeline_mode = #tpu.pipeline_mode<synchronous>, transform_indices = @transform_8, window_bounds = array<i64: 32, 16>}, {pipeline_mode = #tpu.pipeline_mode<synchronous>, transform_indices = @transform_9, window_bounds = array<i64: 1, 16>}, {pipeline_mode = #tpu.pipeline_mode<synchronous>, transform_indices = @transform_10, window_bounds = array<i64: 8, 16>}, {pipeline_mode = #tpu.pipeline_mode<synchronous>, transform_indices = @transform_11, window_bounds = array<i64: 8, 7>}, {pipeline_mode = #tpu.pipeline_mode<synchronous>, transform_indices = @transform_12, window_bounds = array<i64: 16, 32>}, {pipeline_mode = #tpu.pipeline_mode<synchronous>, transform_indices = @transform_13, window_bounds = array<i64: 16, 32>}, {pipeline_mode = #tpu.pipeline_mode<synchronous>, transform_indices = @transform_14, window_bounds = array<i64: 7, 32>}, {pipeline_mode = #tpu.pipeline_mode<synchronous>, transform_indices = @transform_15, window_bounds = array<i64: 1, 32>}, {pipeline_mode = #tpu.pipeline_mode<synchronous>, transform_indices = @transform_16, window_bounds = array<i64: 32, 16>}, {pipeline_mode = #tpu.pipeline_mode<synchronous>, transform_indices = @transform_17, window_bounds = array<i64: 1, 16>}, {transform_indices = @transform_18, window_bounds = array<i64: 8, 16>}, {pipeline_mode = #tpu.pipeline_mode<synchronous>, transform_indices = @transform_19, window_bounds = array<i64: 8, 16>}, {pipeline_mode = #tpu.pipeline_mode<synchronous>, transform_indices = @transform_20, window_bounds = array<i64: 8, 16>}]} {
    %c0_i32 = arith.constant 0 : i32
    %0 = arith.cmpi eq, %arg0, %c0_i32 : i32
    %1 = arith.extui %0 : i1 to i32
    %c0_i32_0 = arith.constant 0 : i32
    %2 = arith.cmpi ne, %1, %c0_i32_0 : i32
    scf.if %2 {
      %cst_33 = arith.constant 0.000000e+00 : f32
      %43 = vector.broadcast %cst_33 : f32 to vector<8x16xf32>
      %c0_34 = arith.constant 0 : index
      %c0_35 = arith.constant 0 : index
      %44 = vector.load %arg20[%c0_34, %c0_35] : memref<8x16xf32, #tpu.memory_space<vmem>>, vector<8x16xf32>
      tpu.vector_store %arg20[%c0_34, %c0_35], %43 {strides = array<i32>} : memref<8x16xf32, #tpu.memory_space<vmem>>, vector<8x16xf32>,
      %cst_36 = arith.constant 0.000000e+00 : f32
      %45 = vector.broadcast %cst_36 : f32 to vector<8x16xf32>
      %c0_37 = arith.constant 0 : index
      %c0_38 = arith.constant 0 : index
      %46 = vector.load %arg21[%c0_37, %c0_38] : memref<8x16xf32, #tpu.memory_space<vmem>>, vector<8x16xf32>
      tpu.vector_store %arg21[%c0_37, %c0_38], %45 {strides = array<i32>} : memref<8x16xf32, #tpu.memory_space<vmem>>, vector<8x16xf32>,
    } else {
    }
    %c0 = arith.constant 0 : index
    %c0_1 = arith.constant 0 : index
    %3 = vector.load %arg3[%c0, %c0_1] : memref<8x1xi32, #tpu.memory_space<vmem>>, vector<8x1xi32>
    %4 = tpu.iota {dimensions = array<i32: 1>} : vector<8x8xi32>
    %5 = vector.broadcast %3 : vector<8x1xi32> to vector<8x8xi32>
    %6 = arith.cmpi eq, %5, %4 : vector<8x8xi32>
    %7 = arith.extui %6 : vector<8x8xi1> to vector<8x8xi32>
    %8 = arith.sitofp %7 : vector<8x8xi32> to vector<8x8xf32>
    %c0_2 = arith.constant 0 : index
    %c0_3 = arith.constant 0 : index
    %9 = vector.load %arg5[%c0_2, %c0_3] : memref<8x32xf32, #tpu.memory_space<vmem>>, vector<8x32xf32>
    %cst = arith.constant dense<0.000000e+00> : vector<8x32xf32>
    %10 = tpu.matmul %8, %9, %cst {dimension_numbers = #tpu.dot_dimension_numbers<[1], [0], [0], [1], [0, 0, 1, 1], [], []>} : vector<8x8xf32>, vector<8x32xf32>, vector<8x32xf32> -> vector<8x32xf32>
    %c0_4 = arith.constant 0 : index
    %c0_5 = arith.constant 0 : index
    %11 = vector.load %arg1[%c0_4, %c0_5] : memref<8x6xf32, #tpu.memory_space<vmem>>, vector<8x6xf32>
    %c0_6 = arith.constant 0 : index
    %c0_7 = arith.constant 0 : index
    %12 = vector.load %arg6[%c0_6, %c0_7] : memref<6x32xf32, #tpu.memory_space<vmem>>, vector<6x32xf32>
    %cst_8 = arith.constant dense<0.000000e+00> : vector<8x32xf32>
    %13 = tpu.matmul %11, %12, %cst_8 {dimension_numbers = #tpu.dot_dimension_numbers<[1], [0], [0], [1], [0, 0, 1, 1], [], []>} : vector<8x6xf32>, vector<6x32xf32>, vector<8x32xf32> -> vector<8x32xf32>
    %14 = arith.addf %10, %13 : vector<8x32xf32>
    %c0_9 = arith.constant 0 : index
    %c0_10 = arith.constant 0 : index
    %15 = vector.load %arg2[%c0_9, %c0_10] : memref<8x16xf32, #tpu.memory_space<vmem>>, vector<8x16xf32>
    %c0_11 = arith.constant 0 : index
    %c0_12 = arith.constant 0 : index
    %16 = vector.load %arg7[%c0_11, %c0_12] : memref<16x32xf32, #tpu.memory_space<vmem>>, vector<16x32xf32>
    %cst_13 = arith.constant dense<0.000000e+00> : vector<8x32xf32>
    %17 = tpu.matmul %15, %16, %cst_13 {dimension_numbers = #tpu.dot_dimension_numbers<[1], [0], [0], [1], [0, 0, 1, 1], [], []>} : vector<8x16xf32>, vector<16x32xf32>, vector<8x32xf32> -> vector<8x32xf32>
    %18 = arith.addf %14, %17 : vector<8x32xf32>
    %c0_14 = arith.constant 0 : index
    %c0_15 = arith.constant 0 : index
    %19 = vector.load %arg8[%c0_14, %c0_15] : memref<1x32xf32, #tpu.memory_space<vmem>>, vector<1x32xf32>
    %20 = vector.broadcast %19 : vector<1x32xf32> to vector<8x32xf32>
    %21 = arith.addf %18, %20 : vector<8x32xf32>
    %cst_16 = arith.constant 0.000000e+00 : f32
    %22 = vector.broadcast %cst_16 : f32 to vector<8x32xf32>
    %23 = arith.maximumf %21, %22 : vector<8x32xf32>
    %c0_17 = arith.constant 0 : index
    %c0_18 = arith.constant 0 : index
    %24 = vector.load %arg9[%c0_17, %c0_18] : memref<32x16xf32, #tpu.memory_space<vmem>>, vector<32x16xf32>
    %cst_19 = arith.constant dense<0.000000e+00> : vector<8x16xf32>
    %25 = tpu.matmul %23, %24, %cst_19 {dimension_numbers = #tpu.dot_dimension_numbers<[1], [0], [0], [1], [0, 0, 1, 1], [], []>} : vector<8x32xf32>, vector<32x16xf32>, vector<8x16xf32> -> vector<8x16xf32>
    %c0_20 = arith.constant 0 : index
    %c0_21 = arith.constant 0 : index
    %26 = vector.load %arg10[%c0_20, %c0_21] : memref<1x16xf32, #tpu.memory_space<vmem>>, vector<1x16xf32>
    %27 = vector.broadcast %26 : vector<1x16xf32> to vector<8x16xf32>
    %28 = arith.addf %25, %27 : vector<8x16xf32>
    %c0_22 = arith.constant 0 : index
    %c0_23 = arith.constant 0 : index
    %29 = vector.load %arg19[%c0_22, %c0_23] : memref<8x16xf32, #tpu.memory_space<vmem>>, vector<8x16xf32>
    tpu.vector_store %arg19[%c0_22, %c0_23], %28 {strides = array<i32>} : memref<8x16xf32, #tpu.memory_space<vmem>>, vector<8x16xf32>,
    %c0_24 = arith.constant 0 : index
    %c0_25 = arith.constant 0 : index
    %30 = vector.load %arg4[%c0_24, %c0_25] : memref<1x8xi32, #tpu.memory_space<vmem>>, vector<1x8xi32>
    %31 = tpu.iota {dimensions = array<i32: 0>} : vector<8x8xi32>
    %32 = vector.broadcast %30 : vector<1x8xi32> to vector<8x8xi32>
    %33 = arith.cmpi eq, %32, %31 : vector<8x8xi32>
    %34 = arith.extui %33 : vector<8x8xi1> to vector<8x8xi32>
    %35 = arith.sitofp %34 : vector<8x8xi32> to vector<8x8xf32>
    %c0_26 = arith.constant 0 : index
    %c0_27 = arith.constant 0 : index
    %36 = vector.load %arg20[%c0_26, %c0_27] : memref<8x16xf32, #tpu.memory_space<vmem>>, vector<8x16xf32>
    %cst_28 = arith.constant dense<0.000000e+00> : vector<8x16xf32>
    %37 = tpu.matmul %35, %28, %cst_28 {dimension_numbers = #tpu.dot_dimension_numbers<[1], [0], [0], [1], [0, 0, 1, 1], [], []>} : vector<8x8xf32>, vector<8x16xf32>, vector<8x16xf32> -> vector<8x16xf32>
    %38 = arith.addf %36, %37 : vector<8x16xf32>
    %c0_29 = arith.constant 0 : index
    %c0_30 = arith.constant 0 : index
    %39 = vector.load %arg20[%c0_29, %c0_30] : memref<8x16xf32, #tpu.memory_space<vmem>>, vector<8x16xf32>
    tpu.vector_store %arg20[%c0_29, %c0_30], %38 {strides = array<i32>} : memref<8x16xf32, #tpu.memory_space<vmem>>, vector<8x16xf32>,
    %c0_i32_31 = arith.constant 0 : i32
    %40 = arith.cmpi eq, %arg0, %c0_i32_31 : i32
    %41 = arith.extui %40 : i1 to i32
    %c0_i32_32 = arith.constant 0 : i32
    %42 = arith.cmpi ne, %41, %c0_i32_32 : i32
    scf.if %42 {
      %c0_33 = arith.constant 0 : index
      %c0_34 = arith.constant 0 : index
      %43 = vector.load %arg20[%c0_33, %c0_34] : memref<8x16xf32, #tpu.memory_space<vmem>>, vector<8x16xf32>
      %c0_35 = arith.constant 0 : index
      %c0_36 = arith.constant 0 : index
      %44 = vector.load %arg13[%c0_35, %c0_36] : memref<16x32xf32, #tpu.memory_space<vmem>>, vector<16x32xf32>
      %cst_37 = arith.constant dense<0.000000e+00> : vector<8x32xf32>
      %45 = tpu.matmul %43, %44, %cst_37 {dimension_numbers = #tpu.dot_dimension_numbers<[1], [0], [0], [1], [0, 0, 1, 1], [], []>} : vector<8x16xf32>, vector<16x32xf32>, vector<8x32xf32> -> vector<8x32xf32>
      %c0_38 = arith.constant 0 : index
      %c0_39 = arith.constant 0 : index
      %46 = vector.load %arg11[%c0_38, %c0_39] : memref<8x16xf32, #tpu.memory_space<vmem>>, vector<8x16xf32>
      %c0_40 = arith.constant 0 : index
      %c0_41 = arith.constant 0 : index
      %47 = vector.load %arg14[%c0_40, %c0_41] : memref<16x32xf32, #tpu.memory_space<vmem>>, vector<16x32xf32>
      %cst_42 = arith.constant dense<0.000000e+00> : vector<8x32xf32>
      %48 = tpu.matmul %46, %47, %cst_42 {dimension_numbers = #tpu.dot_dimension_numbers<[1], [0], [0], [1], [0, 0, 1, 1], [], []>} : vector<8x16xf32>, vector<16x32xf32>, vector<8x32xf32> -> vector<8x32xf32>
      %49 = arith.addf %45, %48 : vector<8x32xf32>
      %c0_43 = arith.constant 0 : index
      %c0_44 = arith.constant 0 : index
      %50 = vector.load %arg12[%c0_43, %c0_44] : memref<8x7xf32, #tpu.memory_space<vmem>>, vector<8x7xf32>
      %c0_45 = arith.constant 0 : index
      %c0_46 = arith.constant 0 : index
      %51 = vector.load %arg15[%c0_45, %c0_46] : memref<7x32xf32, #tpu.memory_space<vmem>>, vector<7x32xf32>
      %cst_47 = arith.constant dense<0.000000e+00> : vector<8x32xf32>
      %52 = tpu.matmul %50, %51, %cst_47 {dimension_numbers = #tpu.dot_dimension_numbers<[1], [0], [0], [1], [0, 0, 1, 1], [], []>} : vector<8x7xf32>, vector<7x32xf32>, vector<8x32xf32> -> vector<8x32xf32>
      %53 = arith.addf %49, %52 : vector<8x32xf32>
      %c0_48 = arith.constant 0 : index
      %c0_49 = arith.constant 0 : index
      %54 = vector.load %arg16[%c0_48, %c0_49] : memref<1x32xf32, #tpu.memory_space<vmem>>, vector<1x32xf32>
      %55 = vector.broadcast %54 : vector<1x32xf32> to vector<8x32xf32>
      %56 = arith.addf %53, %55 : vector<8x32xf32>
      %cst_50 = arith.constant 0.000000e+00 : f32
      %57 = vector.broadcast %cst_50 : f32 to vector<8x32xf32>
      %58 = arith.maximumf %56, %57 : vector<8x32xf32>
      %c0_51 = arith.constant 0 : index
      %c0_52 = arith.constant 0 : index
      %59 = vector.load %arg17[%c0_51, %c0_52] : memref<32x16xf32, #tpu.memory_space<vmem>>, vector<32x16xf32>
      %cst_53 = arith.constant dense<0.000000e+00> : vector<8x16xf32>
      %60 = tpu.matmul %58, %59, %cst_53 {dimension_numbers = #tpu.dot_dimension_numbers<[1], [0], [0], [1], [0, 0, 1, 1], [], []>} : vector<8x32xf32>, vector<32x16xf32>, vector<8x16xf32> -> vector<8x16xf32>
      %c0_54 = arith.constant 0 : index
      %c0_55 = arith.constant 0 : index
      %61 = vector.load %arg18[%c0_54, %c0_55] : memref<1x16xf32, #tpu.memory_space<vmem>>, vector<1x16xf32>
      %62 = vector.broadcast %61 : vector<1x16xf32> to vector<8x16xf32>
      %63 = arith.addf %60, %62 : vector<8x16xf32>
      %c0_56 = arith.constant 0 : index
      %c0_57 = arith.constant 0 : index
      %64 = vector.load %arg21[%c0_56, %c0_57] : memref<8x16xf32, #tpu.memory_space<vmem>>, vector<8x16xf32>
      tpu.vector_store %arg21[%c0_56, %c0_57], %63 {strides = array<i32>} : memref<8x16xf32, #tpu.memory_space<vmem>>, vector<8x16xf32>,
    } else {
    }
    return
  }
  func.func @transform_0(%arg0: i32) -> (i32, i32) {
    %c0_i32 = arith.constant 0 : i32
    %c0_i32_0 = arith.constant 0 : i32
    return %arg0, %c0_i32 : i32, i32
  }
  func.func @transform_1(%arg0: i32) -> (i32, i32) {
    %c0_i32 = arith.constant 0 : i32
    %c0_i32_0 = arith.constant 0 : i32
    return %arg0, %c0_i32 : i32, i32
  }
  func.func @transform_2(%arg0: i32) -> (i32, i32) {
    %c0_i32 = arith.constant 0 : i32
    %c0_i32_0 = arith.constant 0 : i32
    return %arg0, %c0_i32 : i32, i32
  }
  func.func @transform_3(%arg0: i32) -> (i32, i32) {
    %c0_i32 = arith.constant 0 : i32
    %c0_i32_0 = arith.constant 0 : i32
    return %c0_i32, %arg0 : i32, i32
  }
  func.func @transform_4(%arg0: i32) -> (i32, i32) {
    %c0_i32 = arith.constant 0 : i32
    %c0_i32_0 = arith.constant 0 : i32
    %c0_i32_1 = arith.constant 0 : i32
    return %c0_i32, %c0_i32_0 : i32, i32
  }
  func.func @transform_5(%arg0: i32) -> (i32, i32) {
    %c0_i32 = arith.constant 0 : i32
    %c0_i32_0 = arith.constant 0 : i32
    %c0_i32_1 = arith.constant 0 : i32
    return %c0_i32, %c0_i32_0 : i32, i32
  }
  func.func @transform_6(%arg0: i32) -> (i32, i32) {
    %c0_i32 = arith.constant 0 : i32
    %c0_i32_0 = arith.constant 0 : i32
    %c0_i32_1 = arith.constant 0 : i32
    return %c0_i32, %c0_i32_0 : i32, i32
  }
  func.func @transform_7(%arg0: i32) -> (i32, i32) {
    %c0_i32 = arith.constant 0 : i32
    %c0_i32_0 = arith.constant 0 : i32
    %c0_i32_1 = arith.constant 0 : i32
    return %c0_i32, %c0_i32_0 : i32, i32
  }
  func.func @transform_8(%arg0: i32) -> (i32, i32) {
    %c0_i32 = arith.constant 0 : i32
    %c0_i32_0 = arith.constant 0 : i32
    %c0_i32_1 = arith.constant 0 : i32
    return %c0_i32, %c0_i32_0 : i32, i32
  }
  func.func @transform_9(%arg0: i32) -> (i32, i32) {
    %c0_i32 = arith.constant 0 : i32
    %c0_i32_0 = arith.constant 0 : i32
    %c0_i32_1 = arith.constant 0 : i32
    return %c0_i32, %c0_i32_0 : i32, i32
  }
  func.func @transform_10(%arg0: i32) -> (i32, i32) {
    %c0_i32 = arith.constant 0 : i32
    %c0_i32_0 = arith.constant 0 : i32
    %c0_i32_1 = arith.constant 0 : i32
    return %c0_i32, %c0_i32_0 : i32, i32
  }
  func.func @transform_11(%arg0: i32) -> (i32, i32) {
    %c0_i32 = arith.constant 0 : i32
    %c0_i32_0 = arith.constant 0 : i32
    %c0_i32_1 = arith.constant 0 : i32
    return %c0_i32, %c0_i32_0 : i32, i32
  }
  func.func @transform_12(%arg0: i32) -> (i32, i32) {
    %c0_i32 = arith.constant 0 : i32
    %c0_i32_0 = arith.constant 0 : i32
    %c0_i32_1 = arith.constant 0 : i32
    return %c0_i32, %c0_i32_0 : i32, i32
  }
  func.func @transform_13(%arg0: i32) -> (i32, i32) {
    %c0_i32 = arith.constant 0 : i32
    %c0_i32_0 = arith.constant 0 : i32
    %c0_i32_1 = arith.constant 0 : i32
    return %c0_i32, %c0_i32_0 : i32, i32
  }
  func.func @transform_14(%arg0: i32) -> (i32, i32) {
    %c0_i32 = arith.constant 0 : i32
    %c0_i32_0 = arith.constant 0 : i32
    %c0_i32_1 = arith.constant 0 : i32
    return %c0_i32, %c0_i32_0 : i32, i32
  }
  func.func @transform_15(%arg0: i32) -> (i32, i32) {
    %c0_i32 = arith.constant 0 : i32
    %c0_i32_0 = arith.constant 0 : i32
    %c0_i32_1 = arith.constant 0 : i32
    return %c0_i32, %c0_i32_0 : i32, i32
  }
  func.func @transform_16(%arg0: i32) -> (i32, i32) {
    %c0_i32 = arith.constant 0 : i32
    %c0_i32_0 = arith.constant 0 : i32
    %c0_i32_1 = arith.constant 0 : i32
    return %c0_i32, %c0_i32_0 : i32, i32
  }
  func.func @transform_17(%arg0: i32) -> (i32, i32) {
    %c0_i32 = arith.constant 0 : i32
    %c0_i32_0 = arith.constant 0 : i32
    %c0_i32_1 = arith.constant 0 : i32
    return %c0_i32, %c0_i32_0 : i32, i32
  }
  func.func @transform_18(%arg0: i32) -> (i32, i32) {
    %c0_i32 = arith.constant 0 : i32
    %c0_i32_0 = arith.constant 0 : i32
    return %arg0, %c0_i32 : i32, i32
  }
  func.func @transform_19(%arg0: i32) -> (i32, i32) {
    %c0_i32 = arith.constant 0 : i32
    %c0_i32_0 = arith.constant 0 : i32
    %c0_i32_1 = arith.constant 0 : i32
    return %c0_i32, %c0_i32_0 : i32, i32
  }
  func.func @transform_20(%arg0: i32) -> (i32, i32) {
    %c0_i32 = arith.constant 0 : i32
    %c0_i32_0 = arith.constant 0 : i32
    %c0_i32_1 = arith.constant 0 : i32
    return %c0_i32, %c0_i32_0 : i32, i32
  }
}

</mosaic_0001>

<llo_original>
// kernel: rfm_block_forward.2
$region0: #{rfm_block_forward.2}
  #allocation0 [shape = 'u32[]', space=smem, size = 0x4, offset = 0x4, fixed_abs, tag = 'smem constant byte address 0x4 - core index']
  #allocation1 [shape = 'u32[144,128]{1,0:T(1,128)}', space=vmem, size = 0x12000, scoped, tag = 'internal scratch']
  %s0 = inlined_call_operand.vmem [shape: f32[8,17], index: 0, kind: input, shape index: {}]
  %s1 = inlined_call_operand.vmem [shape: s32[8,1], index: 1, kind: input, shape index: {}]
  %s2 = inlined_call_operand.vmem [shape: s32[1,8], index: 2, kind: input, shape index: {}]
  %s3 = inlined_call_operand.vmem [shape: s32[1,8], index: 3, kind: input, shape index: {}]
  %s4 = inlined_call_operand.vmem [shape: f32[8,32], index: 4, kind: input, shape index: {}]
  %s5 = inlined_call_operand.vmem [shape: f32[17,32], index: 5, kind: input, shape index: {}]
  %s6 = inlined_call_operand.vmem [shape: f32[1,32], index: 6, kind: input, shape index: {}]
  %s7 = inlined_call_operand.vmem [shape: f32[32,16], index: 7, kind: input, shape index: {}]
  %s8 = inlined_call_operand.vmem [shape: f32[1,16], index: 8, kind: input, shape index: {}]
  %s9 = inlined_call_operand.hbm [shape: f32[8,16], index: 9, kind: output, shape index: {0}]
  %s10 = inlined_call_operand.vmem [shape: f32[8,16], index: 10, kind: output, shape index: {1}]
  %s11 = inlined_call_operand.vmem [shape: f32[8,16], index: 11, kind: output, shape index: {2}]
  %12 = xla_tuple %s9, %s10, %s11
  %s13 = sld [smem:[#allocation0]]
  $region66: #{rfm_block_forward.2} parent=0
    _
  %s15 = ssub.s32 1, %s13
  %s16 = scalar_select 0, %s15, %s13
  $region1: #{rfm_block_forward.2} parent=0
    #allocation2 [shape = 'u8[4096]{0}', space=vmem, size = 0x1000, scoped, tag = 'output window, operand 0, single buffered']
    #allocation3 [shape = 's32[1]{0}', space=sflag, size = 0x4, scoped, tag = 'scoped memory for rfm_block_forward.2']
    %17 = vsyncpa [#allocation3], 0
    // Predicated region
    $region2: #{rfm_block_forward.2} parent=1 // pred_check
      _
    $region3: #{rfm_block_forward.2} parent=1 // pred_check_branch
      %19 = sbr.rel (0) target = $region5
    $region4: #{rfm_block_forward.2} parent=1 // pred_region
      _
    $region5: #{rfm_block_forward.2} parent=1 // pred_fallthru
      _
    // Predicated region
    $region6: #{rfm_block_forward.2} parent=1 // pred_check
      _
    $region7: #{rfm_block_forward.2} parent=1 // pred_check_branch
      %21 = sbr.rel (0) target = $region9
    $region8: #{rfm_block_forward.2} parent=1 // pred_region
      _
    $region9: #{rfm_block_forward.2} parent=1 // pred_fallthru
      _
    // Predicated region
    $region10: #{rfm_block_forward.2} parent=1 // pred_check
      _
    $region11: #{rfm_block_forward.2} parent=1 // pred_check_branch
      %23 = sbr.rel (0) target = $region13
    $region12: #{rfm_block_forward.2} parent=1 // pred_region
      _
    $region13: #{rfm_block_forward.2} parent=1 // pred_fallthru
      _
    // Predicated region
    $region14: #{rfm_block_forward.2} parent=1 // pred_check
      _
    $region15: #{rfm_block_forward.2} parent=1 // pred_check_branch
      %25 = sbr.rel (0) target = $region17
    $region16: #{rfm_block_forward.2} parent=1 // pred_region
      _
    $region17: #{rfm_block_forward.2} parent=1 // pred_fallthru
      _
    // Predicated region
    $region18: #{rfm_block_forward.2} parent=1 // pred_check
      _
    $region19: #{rfm_block_forward.2} parent=1 // pred_check_branch
      %27 = sbr.rel (0) target = $region21
    $region20: #{rfm_block_forward.2} parent=1 // pred_region
      _
    $region21: #{rfm_block_forward.2} parent=1 // pred_fallthru
      _
    // Predicated region
    $region22: #{rfm_block_forward.2} parent=1 // pred_check
      _
    $region23: #{rfm_block_forward.2} parent=1 // pred_check_branch
      %29 = sbr.rel (0) target = $region25
    $region24: #{rfm_block_forward.2} parent=1 // pred_region
      _
    $region25: #{rfm_block_forward.2} parent=1 // pred_fallthru
      _
    // Predicated region
    $region26: #{rfm_block_forward.2} parent=1 // pred_check
      _
    $region27: #{rfm_block_forward.2} parent=1 // pred_check_branch
      %31 = sbr.rel (0) target = $region29
    $region28: #{rfm_block_forward.2} parent=1 // pred_region
      _
    $region29: #{rfm_block_forward.2} parent=1 // pred_fallthru
      _
    // Predicated region
    $region30: #{rfm_block_forward.2} parent=1 // pred_check
      _
    $region31: #{rfm_block_forward.2} parent=1 // pred_check_branch
      %33 = sbr.rel (0) target = $region33
    $region32: #{rfm_block_forward.2} parent=1 // pred_region
      _
    $region33: #{rfm_block_forward.2} parent=1 // pred_fallthru
      _
    // Predicated region
    $region34: #{rfm_block_forward.2} parent=1 // pred_check
      _
    $region35: #{rfm_block_forward.2} parent=1 // pred_check_branch
      %35 = sbr.rel (0) target = $region37
    $region36: #{rfm_block_forward.2} parent=1 // pred_region
      _
    $region37: #{rfm_block_forward.2} parent=1 // pred_fallthru
      _
    %p36 = scmp.eq.s32.totalorder 0, 0
    // Predicated region
    $region38: #{rfm_block_forward.2} parent=1 // pred_check
      %p37 = pneg %p36
    $region39: #{rfm_block_forward.2} parent=1 // pred_check_branch
      %39 = sbr.rel (%p37) target = $region41
    $region40: #{rfm_block_forward.2} parent=1 // pred_region
      %vm40 = vcmask 130048
      %41 = vst.msk [vmem:[%s10] sm:$0xff] %vm40, 0.0
      %42 = vst.msk [vmem:[%s11] sm:$0xff] %vm40, 0.0
    $region41: #{rfm_block_forward.2} parent=1 // pred_fallthru
      _
    %v43 = vld [vmem:[%s1] sm:$0xff]
    %v44 = vlaneseq
    %v45 = vand.u32 %v44, 127
    %46 = vset.pattern.permute.xlu0 0
    %47 = vperm.xlu0 %46, %v43
    %v48 = vpop.permute.xlu0 %47
    %vm49 = vcmp.eq.s32.totalorder %v48, %v45
    %v50 = vsel %vm49, 1, 0
    %v51 = vcvt.s32.f32 %v50
    %v52 = vld [vmem:[%s4] sm:$0xff]
    %v53 = vld [vmem:[%s0] sm:$0xff]
    %v54 = vld [vmem:[%s5] sm:$0xff]
    %v55 = vld [vmem:[%s5 + $0x8] sm:$0xff]
    %v56 = vld [vmem:[%s5 + $0x10] sm:$0x1]
    %vm57 = vcmask 138240
    %v59 = vsel %vm57, %v53, 0
    %vm61 = vcmask 1040384
    %v63 = vsel %vm61, %v56, 0
    %65 = vmatprep.subr.mxu0 0.0
    %66 = vmatpush1.msra.mxu0 %v54
    %67 = vmatprep.subr.mxu0 0.0
    %68 = vmatpush1.msra.mxu0 %v55
    %69 = vmatprep.subr.mxu0 0.0
    %70 = vmatpush1.msra.mxu0 %v63
    %71 = vmatprep.subr.mxu0 0.0
    %72 = vmatpush1.msra.mxu0 0.0
    %73 = vmatprep.subr.mxu0 0.0
    %74 = vmatpush1.msra.mxu0 0.0
    %75 = vmatprep.subr.mxu0 0.0
    %76 = vmatpush1.msra.mxu0 0.0
    %77 = vmatprep.subr.mxu0 0.0
    %78 = vmatpush1.msra.mxu0 0.0
    %79 = vmatprep.subr.mxu0 0.0
    %80 = vmatpush1.msra.mxu0 0.0
    %81 = vmatprep.subr.mxu0 0.0
    %82 = vmatpush1.msra.mxu0 0.0
    %83 = vmatprep.subr.mxu0 0.0
    %84 = vmatpush1.msra.mxu0 0.0
    %85 = vmatprep.subr.mxu0 0.0
    %86 = vmatpush1.msra.mxu0 0.0
    %87 = vmatprep.subr.mxu0 0.0
    %88 = vmatpush1.msra.mxu0 0.0
    %89 = vmatprep.subr.mxu0 0.0
    %90 = vmatpush1.msra.mxu0 0.0
    %91 = vmatprep.subr.mxu0 0.0
    %92 = vmatpush1.msra.mxu0 0.0
    %93 = vmatprep.subr.mxu0 0.0
    %94 = vmatpush1.msra.mxu0 0.0
    %95 = vmatprep.subr.mxu0 0.0
    %96 = vmatpush1.msra.mxu0 0.0
    %97 = vmatprep.subr.mxu0 0.0
    %98 = vmatpush1.msra.mxu0 0.0
    %99 = vmatprep.subr.mxu0 0.0
    %100 = vmatpush1.msra.mxu0 0.0
    %101 = vmatprep.subr.mxu0 0.0
    %102 = vmatpush1.msra.mxu0 0.0
    %103 = vmatprep.subr.mxu0 0.0
    %104 = vmatpush1.msra.mxu0 0.0
    %105 = vmatprep.subr.mxu0 0.0
    %106 = vmatpush1.msra.mxu0 0.0
    %107 = vmatprep.subr.mxu0 0.0
    %108 = vmatpush1.msra.mxu0 0.0
    %109 = vmatprep.subr.mxu0 0.0
    %110 = vmatpush1.msra.mxu0 0.0
    %111 = vmatprep.subr.mxu0 0.0
    %112 = vmatpush1.msra.mxu0 0.0
    %113 = vmatprep.subr.mxu0 0.0
    %114 = vmatpush1.msra.mxu0 0.0
    %115 = vmatprep.subr.mxu0 0.0
    %116 = vmatpush1.msra.mxu0 0.0
    %117 = vmatprep.subr.mxu0 0.0
    %118 = vmatpush1.msra.mxu0 0.0
    %119 = vmatprep.subr.mxu0 0.0
    %120 = vmatpush1.msra.mxu0 0.0
    %121 = vmatprep.subr.mxu0 0.0
    %122 = vmatpush1.msra.mxu0 0.0
    %123 = vmatprep.subr.mxu0 0.0
    %124 = vmatpush1.msra.mxu0 0.0
    %125 = vmatprep.subr.mxu0 0.0
    %126 = vmatpush1.msra.mxu0 0.0
    %127 = vmatprep.subr.mxu0 0.0
    %128 = vmatpush1.msra.mxu0 0.0
    %129 = vmatprep.mubr.f32.mxu0 0.0
    %130 = vmatmul.mubr.f32.gmra.mrb[0].mxu0 %v59
    %v131 = vpop.f32.mrb[0].mxu0
    %v132 = vadd.f32 0.0, %v131
    %v133 = vpop.f32.mrb[0].mxu0
    %134 = vdwg.mxu0
    %vm135 = vcmask 64512
    %v137 = vsel %vm135, %v51, 0
    %139 = vmatprep.subr.mxu0 0.0
    %140 = vmatpush1.msra.mxu0 %v52
    %141 = vmatprep.subr.mxu0 0.0
    %142 = vmatpush1.msra.mxu0 0.0
    %143 = vmatprep.subr.mxu0 0.0
    %144 = vmatpush1.msra.mxu0 0.0
    %145 = vmatprep.subr.mxu0 0.0
    %146 = vmatpush1.msra.mxu0 0.0
    %147 = vmatprep.subr.mxu0 0.0
    %148 = vmatpush1.msra.mxu0 0.0
    %149 = vmatprep.subr.mxu0 0.0
    %150 = vmatpush1.msra.mxu0 0.0
    %151 = vmatprep.subr.mxu0 0.0
    %152 = vmatpush1.msra.mxu0 0.0
    %153 = vmatprep.subr.mxu0 0.0
    %154 = vmatpush1.msra.mxu0 0.0
    %155 = vmatprep.subr.mxu0 0.0
    %156 = vmatpush1.msra.mxu0 0.0
    %157 = vmatprep.subr.mxu0 0.0
    %158 = vmatpush1.msra.mxu0 0.0
    %159 = vmatprep.subr.mxu0 0.0
    %160 = vmatpush1.msra.mxu0 0.0
    %161 = vmatprep.subr.mxu0 0.0
    %162 = vmatpush1.msra.mxu0 0.0
    %163 = vmatprep.subr.mxu0 0.0
    %164 = vmatpush1.msra.mxu0 0.0
    %165 = vmatprep.subr.mxu0 0.0
    %166 = vmatpush1.msra.mxu0 0.0
    %167 = vmatprep.subr.mxu0 0.0
    %168 = vmatpush1.msra.mxu0 0.0
    %169 = vmatprep.subr.mxu0 0.0
    %170 = vmatpush1.msra.mxu0 0.0
    %171 = vmatprep.subr.mxu0 0.0
    %172 = vmatpush1.msra.mxu0 0.0
    %173 = vmatprep.subr.mxu0 0.0
    %174 = vmatpush1.msra.mxu0 0.0
    %175 = vmatprep.subr.mxu0 0.0
    %176 = vmatpush1.msra.mxu0 0.0
    %177 = vmatprep.subr.mxu0 0.0
    %178 = vmatpush1.msra.mxu0 0.0
    %179 = vmatprep.subr.mxu0 0.0
    %180 = vmatpush1.msra.mxu0 0.0
    %181 = vmatprep.subr.mxu0 0.0
    %182 = vmatpush1.msra.mxu0 0.0
    %183 = vmatprep.subr.mxu0 0.0
    %184 = vmatpush1.msra.mxu0 0.0
    %185 = vmatprep.subr.mxu0 0.0
    %186 = vmatpush1.msra.mxu0 0.0
    %187 = vmatprep.subr.mxu0 0.0
    %188 = vmatpush1.msra.mxu0 0.0
    %189 = vmatprep.subr.mxu0 0.0
    %190 = vmatpush1.msra.mxu0 0.0
    %191 = vmatprep.subr.mxu0 0.0
    %192 = vmatpush1.msra.mxu0 0.0
    %193 = vmatprep.subr.mxu0 0.0
    %194 = vmatpush1.msra.mxu0 0.0
    %195 = vmatprep.subr.mxu0 0.0
    %196 = vmatpush1.msra.mxu0 0.0
    %197 = vmatprep.subr.mxu0 0.0
    %198 = vmatpush1.msra.mxu0 0.0
    %199 = vmatprep.subr.mxu0 0.0
    %200 = vmatpush1.msra.mxu0 0.0
    %201 = vmatprep.subr.mxu0 0.0
    %202 = vmatpush1.msra.mxu0 0.0
    %203 = vmatprep.mubr.f32.mxu0 0.0
    %204 = vmatmul.mubr.f32.gmra.mrb[0].mxu0 %v137
    %v205 = vpop.f32.mrb[0].mxu0
    %v206 = vadd.f32 %v132, %v205
    %v207 = vpop.f32.mrb[0].mxu0
    %208 = vdwg.mxu0
    %v209 = vld [vmem:[%s6] sm:$0x1]
    %v211 = vlaneseq
    %v212 = vshrl.u32 %v211, 7
    %v213 = vsub.s32 0, %v212
    %v214 = vrot.slane %v209, %v213
    %v216 = vadd.f32 %v206, %v214
    %v217 = vmax.f32 %v216, 0.0
    %v218 = vld [vmem:[%s7] sm:$0xff]
    %v219 = vld [vmem:[%s7 + $0x8] sm:$0xff]
    %v220 = vld [vmem:[%s7 + $0x10] sm:$0xff]
    %v221 = vld [vmem:[%s7 + $0x18] sm:$0xff]
    %v222 = vld [vmem:[%s8] sm:$0x1]
    %v224 = vlaneseq
    %v225 = vshrl.u32 %v224, 7
    %v226 = vsub.s32 0, %v225
    %v227 = vrot.slane %v222, %v226
    %vm229 = vcmask 261120
    %v231 = vsel %vm229, %v217, 0
    %233 = vmatprep.subr.mxu0 0.0
    %234 = vmatpush1.msra.mxu0 %v218
    %235 = vmatprep.subr.mxu0 0.0
    %236 = vmatpush1.msra.mxu0 %v219
    %237 = vmatprep.subr.mxu0 0.0
    %238 = vmatpush1.msra.mxu0 %v220
    %239 = vmatprep.subr.mxu0 0.0
    %240 = vmatpush1.msra.mxu0 %v221
    %241 = vmatprep.subr.mxu0 0.0
    %242 = vmatpush1.msra.mxu0 0.0
    %243 = vmatprep.subr.mxu0 0.0
    %244 = vmatpush1.msra.mxu0 0.0
    %245 = vmatprep.subr.mxu0 0.0
    %246 = vmatpush1.msra.mxu0 0.0
    %247 = vmatprep.subr.mxu0 0.0
    %248 = vmatpush1.msra.mxu0 0.0
    %249 = vmatprep.subr.mxu0 0.0
    %250 = vmatpush1.msra.mxu0 0.0
    %251 = vmatprep.subr.mxu0 0.0
    %252 = vmatpush1.msra.mxu0 0.0
    %253 = vmatprep.subr.mxu0 0.0
    %254 = vmatpush1.msra.mxu0 0.0
    %255 = vmatprep.subr.mxu0 0.0
    %256 = vmatpush1.msra.mxu0 0.0
    %257 = vmatprep.subr.mxu0 0.0
    %258 = vmatpush1.msra.mxu0 0.0
    %259 = vmatprep.subr.mxu0 0.0
    %260 = vmatpush1.msra.mxu0 0.0
    %261 = vmatprep.subr.mxu0 0.0
    %262 = vmatpush1.msra.mxu0 0.0
    %263 = vmatprep.subr.mxu0 0.0
    %264 = vmatpush1.msra.mxu0 0.0
    %265 = vmatprep.subr.mxu0 0.0
    %266 = vmatpush1.msra.mxu0 0.0
    %267 = vmatprep.subr.mxu0 0.0
    %268 = vmatpush1.msra.mxu0 0.0
    %269 = vmatprep.subr.mxu0 0.0
    %270 = vmatpush1.msra.mxu0 0.0
    %271 = vmatprep.subr.mxu0 0.0
    %272 = vmatpush1.msra.mxu0 0.0
    %273 = vmatprep.subr.mxu0 0.0
    %274 = vmatpush1.msra.mxu0 0.0
    %275 = vmatprep.subr.mxu0 0.0
    %276 = vmatpush1.msra.mxu0 0.0
    %277 = vmatprep.subr.mxu0 0.0
    %278 = vmatpush1.msra.mxu0 0.0
    %279 = vmatprep.subr.mxu0 0.0
    %280 = vmatpush1.msra.mxu0 0.0
    %281 = vmatprep.subr.mxu0 0.0
    %282 = vmatpush1.msra.mxu0 0.0
    %283 = vmatprep.subr.mxu0 0.0
    %284 = vmatpush1.msra.mxu0 0.0
    %285 = vmatprep.subr.mxu0 0.0
    %286 = vmatpush1.msra.mxu0 0.0
    %287 = vmatprep.subr.mxu0 0.0
    %288 = vmatpush1.msra.mxu0 0.0
    %289 = vmatprep.subr.mxu0 0.0
    %290 = vmatpush1.msra.mxu0 0.0
    %291 = vmatprep.subr.mxu0 0.0
    %292 = vmatpush1.msra.mxu0 0.0
    %293 = vmatprep.subr.mxu0 0.0
    %294 = vmatpush1.msra.mxu0 0.0
    %295 = vmatprep.subr.mxu0 0.0
    %296 = vmatpush1.msra.mxu0 0.0
    %297 = vmatprep.mubr.f32.mxu0 0.0
    %298 = vmatmul.mubr.f32.gmra.mrb[0].mxu0 %v231
    %v299 = vpop.f32.mrb[0].mxu0
    %v300 = vadd.f32 %v227, %v299
    %v301 = vpop.f32.mrb[0].mxu0
    %302 = vdwg.mxu0
    %vm303 = vcmask 130048
    %304 = vst.msk [vmem:[#allocation2] sm:$0xff] %vm303, %v300
    %v305 = vld [vmem:[%s2] sm:$0x1]
    %v306 = vlaneseq
    %v307 = vshrl.u32 %v306, 7
    %v308 = vlaneseq
    %v309 = vshrl.u32 %v308, 7
    %v310 = vsub.s32 0, %v309
    %v311 = vrot.slane %v305, %v310
    %vm312 = vcmp.eq.s32.totalorder %v311, %v307
    %v313 = vsel %vm312, 1, 0
    %v314 = vcvt.s32.f32 %v313
    %v315 = vld [vmem:[%s10] sm:$0xff]
    %v317 = vsel %vm135, %v314, 0
    %319 = vmatprep.subr.mxu0 0.0
    %320 = vmatpush1.msra.mxu0 %v300
    %321 = vmatprep.subr.mxu0 0.0
    %322 = vmatpush1.msra.mxu0 0.0
    %323 = vmatprep.subr.mxu0 0.0
    %324 = vmatpush1.msra.mxu0 0.0
    %325 = vmatprep.subr.mxu0 0.0
    %326 = vmatpush1.msra.mxu0 0.0
    %327 = vmatprep.subr.mxu0 0.0
    %328 = vmatpush1.msra.mxu0 0.0
    %329 = vmatprep.subr.mxu0 0.0
    %330 = vmatpush1.msra.mxu0 0.0
    %331 = vmatprep.subr.mxu0 0.0
    %332 = vmatpush1.msra.mxu0 0.0
    %333 = vmatprep.subr.mxu0 0.0
    %334 = vmatpush1.msra.mxu0 0.0
    %335 = vmatprep.subr.mxu0 0.0
    %336 = vmatpush1.msra.mxu0 0.0
    %337 = vmatprep.subr.mxu0 0.0
    %338 = vmatpush1.msra.mxu0 0.0
    %339 = vmatprep.subr.mxu0 0.0
    %340 = vmatpush1.msra.mxu0 0.0
    %341 = vmatprep.subr.mxu0 0.0
    %342 = vmatpush1.msra.mxu0 0.0
    %343 = vmatprep.subr.mxu0 0.0
    %344 = vmatpush1.msra.mxu0 0.0
    %345 = vmatprep.subr.mxu0 0.0
    %346 = vmatpush1.msra.mxu0 0.0
    %347 = vmatprep.subr.mxu0 0.0
    %348 = vmatpush1.msra.mxu0 0.0
    %349 = vmatprep.subr.mxu0 0.0
    %350 = vmatpush1.msra.mxu0 0.0
    %351 = vmatprep.subr.mxu0 0.0
    %352 = vmatpush1.msra.mxu0 0.0
    %353 = vmatprep.subr.mxu0 0.0
    %354 = vmatpush1.msra.mxu0 0.0
    %355 = vmatprep.subr.mxu0 0.0
    %356 = vmatpush1.msra.mxu0 0.0
    %357 = vmatprep.subr.mxu0 0.0
    %358 = vmatpush1.msra.mxu0 0.0
    %359 = vmatprep.subr.mxu0 0.0
    %360 = vmatpush1.msra.mxu0 0.0
    %361 = vmatprep.subr.mxu0 0.0
    %362 = vmatpush1.msra.mxu0 0.0
    %363 = vmatprep.subr.mxu0 0.0
    %364 = vmatpush1.msra.mxu0 0.0
    %365 = vmatprep.subr.mxu0 0.0
    %366 = vmatpush1.msra.mxu0 0.0
    %367 = vmatprep.subr.mxu0 0.0
    %368 = vmatpush1.msra.mxu0 0.0
    %369 = vmatprep.subr.mxu0 0.0
    %370 = vmatpush1.msra.mxu0 0.0
    %371 = vmatprep.subr.mxu0 0.0
    %372 = vmatpush1.msra.mxu0 0.0
    %373 = vmatprep.subr.mxu0 0.0
    %374 = vmatpush1.msra.mxu0 0.0
    %375 = vmatprep.subr.mxu0 0.0
    %376 = vmatpush1.msra.mxu0 0.0
    %377 = vmatprep.subr.mxu0 0.0
    %378 = vmatpush1.msra.mxu0 0.0
    %379 = vmatprep.subr.mxu0 0.0
    %380 = vmatpush1.msra.mxu0 0.0
    %381 = vmatprep.subr.mxu0 0.0
    %382 = vmatpush1.msra.mxu0 0.0
    %383 = vmatprep.mubr.f32.mxu0 0.0
    %384 = vmatmul.mubr.f32.gmra.mrb[0].mxu0 %v317
    %v385 = vpop.f32.mrb[0].mxu0
    %v386 = vadd.f32 0.0, %v385
    %v387 = vpop.f32.mrb[0].mxu0
    %388 = vdwg.mxu0
    %v389 = vadd.f32 %v315, %v386
    %390 = vst.msk [vmem:[%s10] sm:$0xff] %vm303, %v389
    %v391 = vld [vmem:[%s3] sm:$0x1]
    %v392 = vlaneseq
    %v393 = vshrl.u32 %v392, 7
    %v394 = vsub.s32 0, %v393
    %v395 = vrot.slane %v391, %v394
    %vm396 = vcmp.eq.s32.totalorder %v395, %v307
    %v397 = vsel %vm396, 1, 0
    %v398 = vcvt.s32.f32 %v397
    %v399 = vld [vmem:[%s11] sm:$0xff]
    %v401 = vsel %vm135, %v398, 0
    %403 = vmatprep.subr.mxu0 0.0
    %404 = vmatpush1.msra.mxu0 %v300
    %405 = vmatprep.subr.mxu0 0.0
    %406 = vmatpush1.msra.mxu0 0.0
    %407 = vmatprep.subr.mxu0 0.0
    %408 = vmatpush1.msra.mxu0 0.0
    %409 = vmatprep.subr.mxu0 0.0
    %410 = vmatpush1.msra.mxu0 0.0
    %411 = vmatprep.subr.mxu0 0.0
    %412 = vmatpush1.msra.mxu0 0.0
    %413 = vmatprep.subr.mxu0 0.0
    %414 = vmatpush1.msra.mxu0 0.0
    %415 = vmatprep.subr.mxu0 0.0
    %416 = vmatpush1.msra.mxu0 0.0
    %417 = vmatprep.subr.mxu0 0.0
    %418 = vmatpush1.msra.mxu0 0.0
    %419 = vmatprep.subr.mxu0 0.0
    %420 = vmatpush1.msra.mxu0 0.0
    %421 = vmatprep.subr.mxu0 0.0
    %422 = vmatpush1.msra.mxu0 0.0
    %423 = vmatprep.subr.mxu0 0.0
    %424 = vmatpush1.msra.mxu0 0.0
    %425 = vmatprep.subr.mxu0 0.0
    %426 = vmatpush1.msra.mxu0 0.0
    %427 = vmatprep.subr.mxu0 0.0
    %428 = vmatpush1.msra.mxu0 0.0
    %429 = vmatprep.subr.mxu0 0.0
    %430 = vmatpush1.msra.mxu0 0.0
    %431 = vmatprep.subr.mxu0 0.0
    %432 = vmatpush1.msra.mxu0 0.0
    %433 = vmatprep.subr.mxu0 0.0
    %434 = vmatpush1.msra.mxu0 0.0
    %435 = vmatprep.subr.mxu0 0.0
    %436 = vmatpush1.msra.mxu0 0.0
    %437 = vmatprep.subr.mxu0 0.0
    %438 = vmatpush1.msra.mxu0 0.0
    %439 = vmatprep.subr.mxu0 0.0
    %440 = vmatpush1.msra.mxu0 0.0
    %441 = vmatprep.subr.mxu0 0.0
    %442 = vmatpush1.msra.mxu0 0.0
    %443 = vmatprep.subr.mxu0 0.0
    %444 = vmatpush1.msra.mxu0 0.0
    %445 = vmatprep.subr.mxu0 0.0
    %446 = vmatpush1.msra.mxu0 0.0
    %447 = vmatprep.subr.mxu0 0.0
    %448 = vmatpush1.msra.mxu0 0.0
    %449 = vmatprep.subr.mxu0 0.0
    %450 = vmatpush1.msra.mxu0 0.0
    %451 = vmatprep.subr.mxu0 0.0
    %452 = vmatpush1.msra.mxu0 0.0
    %453 = vmatprep.subr.mxu0 0.0
    %454 = vmatpush1.msra.mxu0 0.0
    %455 = vmatprep.subr.mxu0 0.0
    %456 = vmatpush1.msra.mxu0 0.0
    %457 = vmatprep.subr.mxu0 0.0
    %458 = vmatpush1.msra.mxu0 0.0
    %459 = vmatprep.subr.mxu0 0.0
    %460 = vmatpush1.msra.mxu0 0.0
    %461 = vmatprep.subr.mxu0 0.0
    %462 = vmatpush1.msra.mxu0 0.0
    %463 = vmatprep.subr.mxu0 0.0
    %464 = vmatpush1.msra.mxu0 0.0
    %465 = vmatprep.subr.mxu0 0.0
    %466 = vmatpush1.msra.mxu0 0.0
    %467 = vmatprep.mubr.f32.mxu0 0.0
    %468 = vmatmul.mubr.f32.gmra.mrb[0].mxu0 %v401
    %v469 = vpop.f32.mrb[0].mxu0
    %v470 = vadd.f32 0.0, %v469
    %v471 = vpop.f32.mrb[0].mxu0
    %472 = vdwg.mxu0
    %v473 = vadd.f32 %v399, %v470
    %474 = vst.msk [vmem:[%s11] sm:$0xff] %vm303, %v473
    // Predicated region
    $region42: #{rfm_block_forward.2} parent=1 // pred_check
      _
    $region43: #{rfm_block_forward.2} parent=1 // pred_check_branch
      %476 = sbr.rel (0) target = $region45
    $region44: #{rfm_block_forward.2} parent=1 // pred_region
      %s478 = ssub.s32 128, 128
      %479 = vsyncadd [#allocation3], %s478
      %s481 = sshll.u32 [#allocation2], 4
      %s482 = int_to_ptr.vmem [resolvable:$true] %s481
      %484 = dma.vmem_to_hbm [thread:$0]  %s482, 128, %s9, [#allocation3]
    $region45: #{rfm_block_forward.2} parent=1 // pred_fallthru
      _
    // Predicated region
    $region46: #{rfm_block_forward.2} parent=1 // pred_check
      _
    $region47: #{rfm_block_forward.2} parent=1 // pred_check_branch
      %486 = sbr.rel (0) target = $region49
    $region48: #{rfm_block_forward.2} parent=1 // pred_region
      _
    $region49: #{rfm_block_forward.2} parent=1 // pred_fallthru
      _
    // Predicated region
    $region50: #{rfm_block_forward.2} parent=1 // pred_check
      _
    $region51: #{rfm_block_forward.2} parent=1 // pred_check_branch
      %488 = sbr.rel (0) target = $region53
    $region52: #{rfm_block_forward.2} parent=1 // pred_region
      _
    $region53: #{rfm_block_forward.2} parent=1 // pred_fallthru
      _
    // Predicated region
    $region54: #{rfm_block_forward.2} parent=1 // pred_check
      _
    $region55: #{rfm_block_forward.2} parent=1 // pred_check_branch
      %490 = sbr.rel (0) target = $region57
    $region56: #{rfm_block_forward.2} parent=1 // pred_region
      %491 = dma.done [#allocation3], 128
    $region57: #{rfm_block_forward.2} parent=1 // pred_fallthru
      _
    // Predicated region
    $region58: #{rfm_block_forward.2} parent=1 // pred_check
      _
    $region59: #{rfm_block_forward.2} parent=1 // pred_check_branch
      %493 = sbr.rel (0) target = $region61
    $region60: #{rfm_block_forward.2} parent=1 // pred_region
      _
    $region61: #{rfm_block_forward.2} parent=1 // pred_fallthru
      _
    // Predicated region
    $region62: #{rfm_block_forward.2} parent=1 // pred_check
      _
    $region63: #{rfm_block_forward.2} parent=1 // pred_check_branch
      %495 = sbr.rel (0) target = $region65
    $region64: #{rfm_block_forward.2} parent=1 // pred_region
      _
    $region65: #{rfm_block_forward.2} parent=1 // pred_fallthru
      _
    %496 = vsyncpa [#allocation3], 1

// kernel: rfm_block_forward.3
$region0: #{rfm_block_forward.3}
  #allocation0 [shape = 'u32[]', space=smem, size = 0x4, offset = 0x4, fixed_abs, tag = 'smem constant byte address 0x4 - core index']
  #allocation1 [shape = 'u32[144,128]{1,0:T(1,128)}', space=vmem, size = 0x12000, scoped, tag = 'internal scratch']
  %s0 = inlined_call_operand.vmem [shape: f32[8,6], index: 0, kind: input, shape index: {}]
  %s1 = inlined_call_operand.vmem [shape: f32[8,16], index: 1, kind: input, shape index: {}]
  %s2 = inlined_call_operand.vmem [shape: s32[8,1], index: 2, kind: input, shape index: {}]
  %s3 = inlined_call_operand.vmem [shape: s32[1,8], index: 3, kind: input, shape index: {}]
  %s4 = inlined_call_operand.vmem [shape: f32[8,32], index: 4, kind: input, shape index: {}]
  %s5 = inlined_call_operand.vmem [shape: f32[6,32], index: 5, kind: input, shape index: {}]
  %s6 = inlined_call_operand.vmem [shape: f32[16,32], index: 6, kind: input, shape index: {}]
  %s7 = inlined_call_operand.vmem [shape: f32[1,32], index: 7, kind: input, shape index: {}]
  %s8 = inlined_call_operand.vmem [shape: f32[32,16], index: 8, kind: input, shape index: {}]
  %s9 = inlined_call_operand.vmem [shape: f32[1,16], index: 9, kind: input, shape index: {}]
  %s10 = inlined_call_operand.vmem [shape: f32[8,16], index: 10, kind: input, shape index: {}]
  %s11 = inlined_call_operand.vmem [shape: f32[8,7], index: 11, kind: input, shape index: {}]
  %s12 = inlined_call_operand.vmem [shape: f32[16,32], index: 12, kind: input, shape index: {}]
  %s13 = inlined_call_operand.vmem [shape: f32[16,32], index: 13, kind: input, shape index: {}]
  %s14 = inlined_call_operand.vmem [shape: f32[7,32], index: 14, kind: input, shape index: {}]
  %s15 = inlined_call_operand.vmem [shape: f32[1,32], index: 15, kind: input, shape index: {}]
  %s16 = inlined_call_operand.vmem [shape: f32[32,16], index: 16, kind: input, shape index: {}]
  %s17 = inlined_call_operand.vmem [shape: f32[1,16], index: 17, kind: input, shape index: {}]
  %s18 = inlined_call_operand.hbm [shape: f32[8,16], index: 18, kind: output, shape index: {0}]
  %s19 = inlined_call_operand.hbm [shape: f32[8,16], index: 19, kind: output, shape index: {1}]
  %s20 = inlined_call_operand.vmem [shape: f32[8,16], index: 20, kind: output, shape index: {2}]
  %21 = xla_tuple %s18, %s19, %s20
  %s22 = sld [smem:[#allocation0]]
  $region106: #{rfm_block_forward.3} parent=0
    _
  %s24 = ssub.s32 1, %s22
  %s25 = scalar_select 0, %s24, %s22
  $region1: #{rfm_block_forward.3} parent=0
    #allocation2 [shape = 'u8[4096]{0}', space=vmem, size = 0x1000, scoped, tag = 'output window, operand 0, single buffered']
    #allocation3 [shape = 's32[1]{0}', space=sflag, size = 0x4, scoped, tag = 'scoped memory for rfm_block_forward.3']
    #allocation4 [shape = 'u8[4096]{0}', space=vmem, size = 0x1000, scoped, tag = 'output window, operand 1, single buffered']
    #allocation5 [shape = 's32[1]{0}', space=sflag, size = 0x4, scoped, tag = 'scoped memory for rfm_block_forward.3']
    %26 = vsyncpa [#allocation3], 0
    %27 = vsyncpa [#allocation5], 0
    // Predicated region
    $region2: #{rfm_block_forward.3} parent=1 // pred_check
      _
    $region3: #{rfm_block_forward.3} parent=1 // pred_check_branch
      %29 = sbr.rel (0) target = $region5
    $region4: #{rfm_block_forward.3} parent=1 // pred_region
      _
    $region5: #{rfm_block_forward.3} parent=1 // pred_fallthru
      _
    // Predicated region
    $region6: #{rfm_block_forward.3} parent=1 // pred_check
      _
    $region7: #{rfm_block_forward.3} parent=1 // pred_check_branch
      %31 = sbr.rel (0) target = $region9
    $region8: #{rfm_block_forward.3} parent=1 // pred_region
      _
    $region9: #{rfm_block_forward.3} parent=1 // pred_fallthru
      _
    // Predicated region
    $region10: #{rfm_block_forward.3} parent=1 // pred_check
      _
    $region11: #{rfm_block_forward.3} parent=1 // pred_check_branch
      %33 = sbr.rel (0) target = $region13
    $region12: #{rfm_block_forward.3} parent=1 // pred_region
      _
    $region13: #{rfm_block_forward.3} parent=1 // pred_fallthru
      _
    // Predicated region
    $region14: #{rfm_block_forward.3} parent=1 // pred_check
      _
    $region15: #{rfm_block_forward.3} parent=1 // pred_check_branch
      %35 = sbr.rel (0) target = $region17
    $region16: #{rfm_block_forward.3} parent=1 // pred_region
      _
    $region17: #{rfm_block_forward.3} parent=1 // pred_fallthru
      _
    // Predicated region
    $region18: #{rfm_block_forward.3} parent=1 // pred_check
      _
    $region19: #{rfm_block_forward.3} parent=1 // pred_check_branch
      %37 = sbr.rel (0) target = $region21
    $region20: #{rfm_block_forward.3} parent=1 // pred_region
      _
    $region21: #{rfm_block_forward.3} parent=1 // pred_fallthru
      _
    // Predicated region
    $region22: #{rfm_block_forward.3} parent=1 // pred_check
      _
    $region23: #{rfm_block_forward.3} parent=1 // pred_check_branch
      %39 = sbr.rel (0) target = $region25
    $region24: #{rfm_block_forward.3} parent=1 // pred_region
      _
    $region25: #{rfm_block_forward.3} parent=1 // pred_fallthru
      _
    // Predicated region
    $region26: #{rfm_block_forward.3} parent=1 // pred_check
      _
    $region27: #{rfm_block_forward.3} parent=1 // pred_check_branch
      %41 = sbr.rel (0) target = $region29
    $region28: #{rfm_block_forward.3} parent=1 // pred_region
      _
    $region29: #{rfm_block_forward.3} parent=1 // pred_fallthru
      _
    // Predicated region
    $region30: #{rfm_block_forward.3} parent=1 // pred_check
      _
    $region31: #{rfm_block_forward.3} parent=1 // pred_check_branch
      %43 = sbr.rel (0) target = $region33
    $region32: #{rfm_block_forward.3} parent=1 // pred_region
      _
    $region33: #{rfm_block_forward.3} parent=1 // pred_fallthru
      _
    // Predicated region
    $region34: #{rfm_block_forward.3} parent=1 // pred_check
      _
    $region35: #{rfm_block_forward.3} parent=1 // pred_check_branch
      %45 = sbr.rel (0) target = $region37
    $region36: #{rfm_block_forward.3} parent=1 // pred_region
      _
    $region37: #{rfm_block_forward.3} parent=1 // pred_fallthru
      _
    // Predicated region
    $region38: #{rfm_block_forward.3} parent=1 // pred_check
      _
    $region39: #{rfm_block_forward.3} parent=1 // pred_check_branch
      %47 = sbr.rel (0) target = $region41
    $region40: #{rfm_block_forward.3} parent=1 // pred_region
      _
    $region41: #{rfm_block_forward.3} parent=1 // pred_fallthru
      _
    // Predicated region
    $region42: #{rfm_block_forward.3} parent=1 // pred_check
      _
    $region43: #{rfm_block_forward.3} parent=1 // pred_check_branch
      %49 = sbr.rel (0) target = $region45
    $region44: #{rfm_block_forward.3} parent=1 // pred_region
      _
    $region45: #{rfm_block_forward.3} parent=1 // pred_fallthru
      _
    // Predicated region
    $region46: #{rfm_block_forward.3} parent=1 // pred_check
      _
    $region47: #{rfm_block_forward.3} parent=1 // pred_check_branch
      %51 = sbr.rel (0) target = $region49
    $region48: #{rfm_block_forward.3} parent=1 // pred_region
      _
    $region49: #{rfm_block_forward.3} parent=1 // pred_fallthru
      _
    // Predicated region
    $region50: #{rfm_block_forward.3} parent=1 // pred_check
      _
    $region51: #{rfm_block_forward.3} parent=1 // pred_check_branch
      %53 = sbr.rel (0) target = $region53
    $region52: #{rfm_block_forward.3} parent=1 // pred_region
      _
    $region53: #{rfm_block_forward.3} parent=1 // pred_fallthru
      _
    // Predicated region
    $region54: #{rfm_block_forward.3} parent=1 // pred_check
      _
    $region55: #{rfm_block_forward.3} parent=1 // pred_check_branch
      %55 = sbr.rel (0) target = $region57
    $region56: #{rfm_block_forward.3} parent=1 // pred_region
      _
    $region57: #{rfm_block_forward.3} parent=1 // pred_fallthru
      _
    // Predicated region
    $region58: #{rfm_block_forward.3} parent=1 // pred_check
      _
    $region59: #{rfm_block_forward.3} parent=1 // pred_check_branch
      %57 = sbr.rel (0) target = $region61
    $region60: #{rfm_block_forward.3} parent=1 // pred_region
      _
    $region61: #{rfm_block_forward.3} parent=1 // pred_fallthru
      _
    // Predicated region
    $region62: #{rfm_block_forward.3} parent=1 // pred_check
      _
    $region63: #{rfm_block_forward.3} parent=1 // pred_check_branch
      %59 = sbr.rel (0) target = $region65
    $region64: #{rfm_block_forward.3} parent=1 // pred_region
      _
    $region65: #{rfm_block_forward.3} parent=1 // pred_fallthru
      _
    // Predicated region
    $region66: #{rfm_block_forward.3} parent=1 // pred_check
      _
    $region67: #{rfm_block_forward.3} parent=1 // pred_check_branch
      %61 = sbr.rel (0) target = $region69
    $region68: #{rfm_block_forward.3} parent=1 // pred_region
      _
    $region69: #{rfm_block_forward.3} parent=1 // pred_fallthru
      _
    // Predicated region
    $region70: #{rfm_block_forward.3} parent=1 // pred_check
      _
    $region71: #{rfm_block_forward.3} parent=1 // pred_check_branch
      %63 = sbr.rel (0) target = $region73
    $region72: #{rfm_block_forward.3} parent=1 // pred_region
      _
    $region73: #{rfm_block_forward.3} parent=1 // pred_fallthru
      _
    %p64 = scmp.eq.s32.totalorder 0, 0
    // Predicated region
    $region74: #{rfm_block_forward.3} parent=1 // pred_check
      %p65 = pneg %p64
    $region75: #{rfm_block_forward.3} parent=1 // pred_check_branch
      %67 = sbr.rel (%p65) target = $region77
    $region76: #{rfm_block_forward.3} parent=1 // pred_region
      %vm68 = vcmask 130048
      %69 = vst.msk [vmem:[#allocation4] sm:$0xff] %vm68, 0.0
      %70 = vst.msk [vmem:[%s20] sm:$0xff] %vm68, 0.0
    $region77: #{rfm_block_forward.3} parent=1 // pred_fallthru
      _
    %v71 = vld [vmem:[%s2] sm:$0xff]
    %v72 = vlaneseq
    %v73 = vand.u32 %v72, 127
    %74 = vset.pattern.permute.xlu0 0
    %75 = vperm.xlu0 %74, %v71
    %v76 = vpop.permute.xlu0 %75
    %vm77 = vcmp.eq.s32.totalorder %v76, %v73
    %v78 = vsel %vm77, 1, 0
    %v79 = vcvt.s32.f32 %v78
    %v80 = vld [vmem:[%s4] sm:$0xff]
    %v81 = vld [vmem:[%s0] sm:$0xff]
    %v82 = vld [vmem:[%s5] sm:$0x3f]
    %vm83 = vcmask 48128
    %v85 = vsel %vm83, %v81, 0
    %vm87 = vcmask 1045504
    %v89 = vsel %vm87, %v82, 0
    %91 = vmatprep.subr.mxu0 0.0
    %92 = vmatpush1.msra.mxu0 %v89
    %93 = vmatprep.subr.mxu0 0.0
    %94 = vmatpush1.msra.mxu0 0.0
    %95 = vmatprep.subr.mxu0 0.0
    %96 = vmatpush1.msra.mxu0 0.0
    %97 = vmatprep.subr.mxu0 0.0
    %98 = vmatpush1.msra.mxu0 0.0
    %99 = vmatprep.subr.mxu0 0.0
    %100 = vmatpush1.msra.mxu0 0.0
    %101 = vmatprep.subr.mxu0 0.0
    %102 = vmatpush1.msra.mxu0 0.0
    %103 = vmatprep.subr.mxu0 0.0
    %104 = vmatpush1.msra.mxu0 0.0
    %105 = vmatprep.subr.mxu0 0.0
    %106 = vmatpush1.msra.mxu0 0.0
    %107 = vmatprep.subr.mxu0 0.0
    %108 = vmatpush1.msra.mxu0 0.0
    %109 = vmatprep.subr.mxu0 0.0
    %110 = vmatpush1.msra.mxu0 0.0
    %111 = vmatprep.subr.mxu0 0.0
    %112 = vmatpush1.msra.mxu0 0.0
    %113 = vmatprep.subr.mxu0 0.0
    %114 = vmatpush1.msra.mxu0 0.0
    %115 = vmatprep.subr.mxu0 0.0
    %116 = vmatpush1.msra.mxu0 0.0
    %117 = vmatprep.subr.mxu0 0.0
    %118 = vmatpush1.msra.mxu0 0.0
    %119 = vmatprep.subr.mxu0 0.0
    %120 = vmatpush1.msra.mxu0 0.0
    %121 = vmatprep.subr.mxu0 0.0
    %122 = vmatpush1.msra.mxu0 0.0
    %123 = vmatprep.subr.mxu0 0.0
    %124 = vmatpush1.msra.mxu0 0.0
    %125 = vmatprep.subr.mxu0 0.0
    %126 = vmatpush1.msra.mxu0 0.0
    %127 = vmatprep.subr.mxu0 0.0
    %128 = vmatpush1.msra.mxu0 0.0
    %129 = vmatprep.subr.mxu0 0.0
    %130 = vmatpush1.msra.mxu0 0.0
    %131 = vmatprep.subr.mxu0 0.0
    %132 = vmatpush1.msra.mxu0 0.0
    %133 = vmatprep.subr.mxu0 0.0
    %134 = vmatpush1.msra.mxu0 0.0
    %135 = vmatprep.subr.mxu0 0.0
    %136 = vmatpush1.msra.mxu0 0.0
    %137 = vmatprep.subr.mxu0 0.0
    %138 = vmatpush1.msra.mxu0 0.0
    %139 = vmatprep.subr.mxu0 0.0
    %140 = vmatpush1.msra.mxu0 0.0
    %141 = vmatprep.subr.mxu0 0.0
    %142 = vmatpush1.msra.mxu0 0.0
    %143 = vmatprep.subr.mxu0 0.0
    %144 = vmatpush1.msra.mxu0 0.0
    %145 = vmatprep.subr.mxu0 0.0
    %146 = vmatpush1.msra.mxu0 0.0
    %147 = vmatprep.subr.mxu0 0.0
    %148 = vmatpush1.msra.mxu0 0.0
    %149 = vmatprep.subr.mxu0 0.0
    %150 = vmatpush1.msra.mxu0 0.0
    %151 = vmatprep.subr.mxu0 0.0
    %152 = vmatpush1.msra.mxu0 0.0
    %153 = vmatprep.subr.mxu0 0.0
    %154 = vmatpush1.msra.mxu0 0.0
    %155 = vmatprep.mubr.f32.mxu0 0.0
    %156 = vmatmul.mubr.f32.gmra.mrb[0].mxu0 %v85
    %v157 = vpop.f32.mrb[0].mxu0
    %v158 = vadd.f32 0.0, %v157
    %v159 = vpop.f32.mrb[0].mxu0
    %160 = vdwg.mxu0
    %vm161 = vcmask 64512
    %v163 = vsel %vm161, %v79, 0
    %165 = vmatprep.subr.mxu0 0.0
    %166 = vmatpush1.msra.mxu0 %v80
    %167 = vmatprep.subr.mxu0 0.0
    %168 = vmatpush1.msra.mxu0 0.0
    %169 = vmatprep.subr.mxu0 0.0
    %170 = vmatpush1.msra.mxu0 0.0
    %171 = vmatprep.subr.mxu0 0.0
    %172 = vmatpush1.msra.mxu0 0.0
    %173 = vmatprep.subr.mxu0 0.0
    %174 = vmatpush1.msra.mxu0 0.0
    %175 = vmatprep.subr.mxu0 0.0
    %176 = vmatpush1.msra.mxu0 0.0
    %177 = vmatprep.subr.mxu0 0.0
    %178 = vmatpush1.msra.mxu0 0.0
    %179 = vmatprep.subr.mxu0 0.0
    %180 = vmatpush1.msra.mxu0 0.0
    %181 = vmatprep.subr.mxu0 0.0
    %182 = vmatpush1.msra.mxu0 0.0
    %183 = vmatprep.subr.mxu0 0.0
    %184 = vmatpush1.msra.mxu0 0.0
    %185 = vmatprep.subr.mxu0 0.0
    %186 = vmatpush1.msra.mxu0 0.0
    %187 = vmatprep.subr.mxu0 0.0
    %188 = vmatpush1.msra.mxu0 0.0
    %189 = vmatprep.subr.mxu0 0.0
    %190 = vmatpush1.msra.mxu0 0.0
    %191 = vmatprep.subr.mxu0 0.0
    %192 = vmatpush1.msra.mxu0 0.0
    %193 = vmatprep.subr.mxu0 0.0
    %194 = vmatpush1.msra.mxu0 0.0
    %195 = vmatprep.subr.mxu0 0.0
    %196 = vmatpush1.msra.mxu0 0.0
    %197 = vmatprep.subr.mxu0 0.0
    %198 = vmatpush1.msra.mxu0 0.0
    %199 = vmatprep.subr.mxu0 0.0
    %200 = vmatpush1.msra.mxu0 0.0
    %201 = vmatprep.subr.mxu0 0.0
    %202 = vmatpush1.msra.mxu0 0.0
    %203 = vmatprep.subr.mxu0 0.0
    %204 = vmatpush1.msra.mxu0 0.0
    %205 = vmatprep.subr.mxu0 0.0
    %206 = vmatpush1.msra.mxu0 0.0
    %207 = vmatprep.subr.mxu0 0.0
    %208 = vmatpush1.msra.mxu0 0.0
    %209 = vmatprep.subr.mxu0 0.0
    %210 = vmatpush1.msra.mxu0 0.0
    %211 = vmatprep.subr.mxu0 0.0
    %212 = vmatpush1.msra.mxu0 0.0
    %213 = vmatprep.subr.mxu0 0.0
    %214 = vmatpush1.msra.mxu0 0.0
    %215 = vmatprep.subr.mxu0 0.0
    %216 = vmatpush1.msra.mxu0 0.0
    %217 = vmatprep.subr.mxu0 0.0
    %218 = vmatpush1.msra.mxu0 0.0
    %219 = vmatprep.subr.mxu0 0.0
    %220 = vmatpush1.msra.mxu0 0.0
    %221 = vmatprep.subr.mxu0 0.0
    %222 = vmatpush1.msra.mxu0 0.0
    %223 = vmatprep.subr.mxu0 0.0
    %224 = vmatpush1.msra.mxu0 0.0
    %225 = vmatprep.subr.mxu0 0.0
    %226 = vmatpush1.msra.mxu0 0.0
    %227 = vmatprep.subr.mxu0 0.0
    %228 = vmatpush1.msra.mxu0 0.0
    %229 = vmatprep.mubr.f32.mxu0 0.0
    %230 = vmatmul.mubr.f32.gmra.mrb[0].mxu0 %v163
    %v231 = vpop.f32.mrb[0].mxu0
    %v232 = vadd.f32 %v158, %v231
    %v233 = vpop.f32.mrb[0].mxu0
    %234 = vdwg.mxu0
    %v235 = vld [vmem:[%s1] sm:$0xff]
    %v236 = vld [vmem:[%s6] sm:$0xff]
    %v237 = vld [vmem:[%s6 + $0x8] sm:$0xff]
    %vm238 = vcmask 130048
    %v240 = vsel %vm238, %v235, 0
    %242 = vmatprep.subr.mxu0 0.0
    %243 = vmatpush1.msra.mxu0 %v236
    %244 = vmatprep.subr.mxu0 0.0
    %245 = vmatpush1.msra.mxu0 %v237
    %246 = vmatprep.subr.mxu0 0.0
    %247 = vmatpush1.msra.mxu0 0.0
    %248 = vmatprep.subr.mxu0 0.0
    %249 = vmatpush1.msra.mxu0 0.0
    %250 = vmatprep.subr.mxu0 0.0
    %251 = vmatpush1.msra.mxu0 0.0
    %252 = vmatprep.subr.mxu0 0.0
    %253 = vmatpush1.msra.mxu0 0.0
    %254 = vmatprep.subr.mxu0 0.0
    %255 = vmatpush1.msra.mxu0 0.0
    %256 = vmatprep.subr.mxu0 0.0
    %257 = vmatpush1.msra.mxu0 0.0
    %258 = vmatprep.subr.mxu0 0.0
    %259 = vmatpush1.msra.mxu0 0.0
    %260 = vmatprep.subr.mxu0 0.0
    %261 = vmatpush1.msra.mxu0 0.0
    %262 = vmatprep.subr.mxu0 0.0
    %263 = vmatpush1.msra.mxu0 0.0
    %264 = vmatprep.subr.mxu0 0.0
    %265 = vmatpush1.msra.mxu0 0.0
    %266 = vmatprep.subr.mxu0 0.0
    %267 = vmatpush1.msra.mxu0 0.0
    %268 = vmatprep.subr.mxu0 0.0
    %269 = vmatpush1.msra.mxu0 0.0
    %270 = vmatprep.subr.mxu0 0.0
    %271 = vmatpush1.msra.mxu0 0.0
    %272 = vmatprep.subr.mxu0 0.0
    %273 = vmatpush1.msra.mxu0 0.0
    %274 = vmatprep.subr.mxu0 0.0
    %275 = vmatpush1.msra.mxu0 0.0
    %276 = vmatprep.subr.mxu0 0.0
    %277 = vmatpush1.msra.mxu0 0.0
    %278 = vmatprep.subr.mxu0 0.0
    %279 = vmatpush1.msra.mxu0 0.0
    %280 = vmatprep.subr.mxu0 0.0
    %281 = vmatpush1.msra.mxu0 0.0
    %282 = vmatprep.subr.mxu0 0.0
    %283 = vmatpush1.msra.mxu0 0.0
    %284 = vmatprep.subr.mxu0 0.0
    %285 = vmatpush1.msra.mxu0 0.0
    %286 = vmatprep.subr.mxu0 0.0
    %287 = vmatpush1.msra.mxu0 0.0
    %288 = vmatprep.subr.mxu0 0.0
    %289 = vmatpush1.msra.mxu0 0.0
    %290 = vmatprep.subr.mxu0 0.0
    %291 = vmatpush1.msra.mxu0 0.0
    %292 = vmatprep.subr.mxu0 0.0
    %293 = vmatpush1.msra.mxu0 0.0
    %294 = vmatprep.subr.mxu0 0.0
    %295 = vmatpush1.msra.mxu0 0.0
    %296 = vmatprep.subr.mxu0 0.0
    %297 = vmatpush1.msra.mxu0 0.0
    %298 = vmatprep.subr.mxu0 0.0
    %299 = vmatpush1.msra.mxu0 0.0
    %300 = vmatprep.subr.mxu0 0.0
    %301 = vmatpush1.msra.mxu0 0.0
    %302 = vmatprep.subr.mxu0 0.0
    %303 = vmatpush1.msra.mxu0 0.0
    %304 = vmatprep.subr.mxu0 0.0
    %305 = vmatpush1.msra.mxu0 0.0
    %306 = vmatprep.mubr.f32.mxu0 0.0
    %307 = vmatmul.mubr.f32.gmra.mrb[0].mxu0 %v240
    %v308 = vpop.f32.mrb[0].mxu0
    %v309 = vadd.f32 0.0, %v308
    %v310 = vpop.f32.mrb[0].mxu0
    %311 = vdwg.mxu0
    %v312 = vadd.f32 %v232, %v309
    %v313 = vld [vmem:[%s7] sm:$0x1]
    %v315 = vlaneseq
    %v316 = vshrl.u32 %v315, 7
    %v317 = vsub.s32 0, %v316
    %v318 = vrot.slane %v313, %v317
    %v320 = vadd.f32 %v312, %v318
    %v321 = vmax.f32 %v320, 0.0
    %v322 = vld [vmem:[%s8] sm:$0xff]
    %v323 = vld [vmem:[%s8 + $0x8] sm:$0xff]
    %v324 = vld [vmem:[%s8 + $0x10] sm:$0xff]
    %v325 = vld [vmem:[%s8 + $0x18] sm:$0xff]
    %v326 = vld [vmem:[%s9] sm:$0x1]
    %v328 = vlaneseq
    %v329 = vshrl.u32 %v328, 7
    %v330 = vsub.s32 0, %v329
    %v331 = vrot.slane %v326, %v330
    %vm333 = vcmask 261120
    %v335 = vsel %vm333, %v321, 0
    %337 = vmatprep.subr.mxu0 0.0
    %338 = vmatpush1.msra.mxu0 %v322
    %339 = vmatprep.subr.mxu0 0.0
    %340 = vmatpush1.msra.mxu0 %v323
    %341 = vmatprep.subr.mxu0 0.0
    %342 = vmatpush1.msra.mxu0 %v324
    %343 = vmatprep.subr.mxu0 0.0
    %344 = vmatpush1.msra.mxu0 %v325
    %345 = vmatprep.subr.mxu0 0.0
    %346 = vmatpush1.msra.mxu0 0.0
    %347 = vmatprep.subr.mxu0 0.0
    %348 = vmatpush1.msra.mxu0 0.0
    %349 = vmatprep.subr.mxu0 0.0
    %350 = vmatpush1.msra.mxu0 0.0
    %351 = vmatprep.subr.mxu0 0.0
    %352 = vmatpush1.msra.mxu0 0.0
    %353 = vmatprep.subr.mxu0 0.0
    %354 = vmatpush1.msra.mxu0 0.0
    %355 = vmatprep.subr.mxu0 0.0
    %356 = vmatpush1.msra.mxu0 0.0
    %357 = vmatprep.subr.mxu0 0.0
    %358 = vmatpush1.msra.mxu0 0.0
    %359 = vmatprep.subr.mxu0 0.0
    %360 = vmatpush1.msra.mxu0 0.0
    %361 = vmatprep.subr.mxu0 0.0
    %362 = vmatpush1.msra.mxu0 0.0
    %363 = vmatprep.subr.mxu0 0.0
    %364 = vmatpush1.msra.mxu0 0.0
    %365 = vmatprep.subr.mxu0 0.0
    %366 = vmatpush1.msra.mxu0 0.0
    %367 = vmatprep.subr.mxu0 0.0
    %368 = vmatpush1.msra.mxu0 0.0
    %369 = vmatprep.subr.mxu0 0.0
    %370 = vmatpush1.msra.mxu0 0.0
    %371 = vmatprep.subr.mxu0 0.0
    %372 = vmatpush1.msra.mxu0 0.0
    %373 = vmatprep.subr.mxu0 0.0
    %374 = vmatpush1.msra.mxu0 0.0
    %375 = vmatprep.subr.mxu0 0.0
    %376 = vmatpush1.msra.mxu0 0.0
    %377 = vmatprep.subr.mxu0 0.0
    %378 = vmatpush1.msra.mxu0 0.0
    %379 = vmatprep.subr.mxu0 0.0
    %380 = vmatpush1.msra.mxu0 0.0
    %381 = vmatprep.subr.mxu0 0.0
    %382 = vmatpush1.msra.mxu0 0.0
    %383 = vmatprep.subr.mxu0 0.0
    %384 = vmatpush1.msra.mxu0 0.0
    %385 = vmatprep.subr.mxu0 0.0
    %386 = vmatpush1.msra.mxu0 0.0
    %387 = vmatprep.subr.mxu0 0.0
    %388 = vmatpush1.msra.mxu0 0.0
    %389 = vmatprep.subr.mxu0 0.0
    %390 = vmatpush1.msra.mxu0 0.0
    %391 = vmatprep.subr.mxu0 0.0
    %392 = vmatpush1.msra.mxu0 0.0
    %393 = vmatprep.subr.mxu0 0.0
    %394 = vmatpush1.msra.mxu0 0.0
    %395 = vmatprep.subr.mxu0 0.0
    %396 = vmatpush1.msra.mxu0 0.0
    %397 = vmatprep.subr.mxu0 0.0
    %398 = vmatpush1.msra.mxu0 0.0
    %399 = vmatprep.subr.mxu0 0.0
    %400 = vmatpush1.msra.mxu0 0.0
    %401 = vmatprep.mubr.f32.mxu0 0.0
    %402 = vmatmul.mubr.f32.gmra.mrb[0].mxu0 %v335
    %v403 = vpop.f32.mrb[0].mxu0
    %v404 = vadd.f32 %v331, %v403
    %v405 = vpop.f32.mrb[0].mxu0
    %406 = vdwg.mxu0
    %407 = vst.msk [vmem:[#allocation2] sm:$0xff] %vm238, %v404
    %v408 = vld [vmem:[%s3] sm:$0x1]
    %v409 = vlaneseq
    %v410 = vshrl.u32 %v409, 7
    %v411 = vlaneseq
    %v412 = vshrl.u32 %v411, 7
    %v413 = vsub.s32 0, %v412
    %v414 = vrot.slane %v408, %v413
    %vm415 = vcmp.eq.s32.totalorder %v414, %v410
    %v416 = vsel %vm415, 1, 0
    %v417 = vcvt.s32.f32 %v416
    %v418 = vld [vmem:[#allocation4] sm:$0xff]
    %v420 = vsel %vm161, %v417, 0
    %422 = vmatprep.subr.mxu0 0.0
    %423 = vmatpush1.msra.mxu0 %v404
    %424 = vmatprep.subr.mxu0 0.0
    %425 = vmatpush1.msra.mxu0 0.0
    %426 = vmatprep.subr.mxu0 0.0
    %427 = vmatpush1.msra.mxu0 0.0
    %428 = vmatprep.subr.mxu0 0.0
    %429 = vmatpush1.msra.mxu0 0.0
    %430 = vmatprep.subr.mxu0 0.0
    %431 = vmatpush1.msra.mxu0 0.0
    %432 = vmatprep.subr.mxu0 0.0
    %433 = vmatpush1.msra.mxu0 0.0
    %434 = vmatprep.subr.mxu0 0.0
    %435 = vmatpush1.msra.mxu0 0.0
    %436 = vmatprep.subr.mxu0 0.0
    %437 = vmatpush1.msra.mxu0 0.0
    %438 = vmatprep.subr.mxu0 0.0
    %439 = vmatpush1.msra.mxu0 0.0
    %440 = vmatprep.subr.mxu0 0.0
    %441 = vmatpush1.msra.mxu0 0.0
    %442 = vmatprep.subr.mxu0 0.0
    %443 = vmatpush1.msra.mxu0 0.0
    %444 = vmatprep.subr.mxu0 0.0
    %445 = vmatpush1.msra.mxu0 0.0
    %446 = vmatprep.subr.mxu0 0.0
    %447 = vmatpush1.msra.mxu0 0.0
    %448 = vmatprep.subr.mxu0 0.0
    %449 = vmatpush1.msra.mxu0 0.0
    %450 = vmatprep.subr.mxu0 0.0
    %451 = vmatpush1.msra.mxu0 0.0
    %452 = vmatprep.subr.mxu0 0.0
    %453 = vmatpush1.msra.mxu0 0.0
    %454 = vmatprep.subr.mxu0 0.0
    %455 = vmatpush1.msra.mxu0 0.0
    %456 = vmatprep.subr.mxu0 0.0
    %457 = vmatpush1.msra.mxu0 0.0
    %458 = vmatprep.subr.mxu0 0.0
    %459 = vmatpush1.msra.mxu0 0.0
    %460 = vmatprep.subr.mxu0 0.0
    %461 = vmatpush1.msra.mxu0 0.0
    %462 = vmatprep.subr.mxu0 0.0
    %463 = vmatpush1.msra.mxu0 0.0
    %464 = vmatprep.subr.mxu0 0.0
    %465 = vmatpush1.msra.mxu0 0.0
    %466 = vmatprep.subr.mxu0 0.0
    %467 = vmatpush1.msra.mxu0 0.0
    %468 = vmatprep.subr.mxu0 0.0
    %469 = vmatpush1.msra.mxu0 0.0
    %470 = vmatprep.subr.mxu0 0.0
    %471 = vmatpush1.msra.mxu0 0.0
    %472 = vmatprep.subr.mxu0 0.0
    %473 = vmatpush1.msra.mxu0 0.0
    %474 = vmatprep.subr.mxu0 0.0
    %475 = vmatpush1.msra.mxu0 0.0
    %476 = vmatprep.subr.mxu0 0.0
    %477 = vmatpush1.msra.mxu0 0.0
    %478 = vmatprep.subr.mxu0 0.0
    %479 = vmatpush1.msra.mxu0 0.0
    %480 = vmatprep.subr.mxu0 0.0
    %481 = vmatpush1.msra.mxu0 0.0
    %482 = vmatprep.subr.mxu0 0.0
    %483 = vmatpush1.msra.mxu0 0.0
    %484 = vmatprep.subr.mxu0 0.0
    %485 = vmatpush1.msra.mxu0 0.0
    %486 = vmatprep.mubr.f32.mxu0 0.0
    %487 = vmatmul.mubr.f32.gmra.mrb[0].mxu0 %v420
    %v488 = vpop.f32.mrb[0].mxu0
    %v489 = vadd.f32 0.0, %v488
    %v490 = vpop.f32.mrb[0].mxu0
    %491 = vdwg.mxu0
    %v492 = vadd.f32 %v418, %v489
    %493 = vst.msk [vmem:[#allocation4] sm:$0xff] %vm238, %v492
    // Predicated region
    $region78: #{rfm_block_forward.3} parent=1 // pred_check
      %p494 = pneg %p64
    $region79: #{rfm_block_forward.3} parent=1 // pred_check_branch
      %496 = sbr.rel (%p494) target = $region81
    $region80: #{rfm_block_forward.3} parent=1 // pred_region
      %v497 = vld [vmem:[#allocation4] sm:$0xff]
      %v498 = vld [vmem:[%s12] sm:$0xff]
      %v499 = vld [vmem:[%s12 + $0x8] sm:$0xff]
      %v500 = vld [vmem:[%s10] sm:$0xff]
      %v501 = vld [vmem:[%s13] sm:$0xff]
      %v502 = vld [vmem:[%s13 + $0x8] sm:$0xff]
      %v504 = vsel %vm238, %v500, 0
      %506 = vmatprep.subr.mxu0 0.0
      %507 = vmatpush1.msra.mxu0 %v501
      %508 = vmatprep.subr.mxu0 0.0
      %509 = vmatpush1.msra.mxu0 %v502
      %510 = vmatprep.subr.mxu0 0.0
      %511 = vmatpush1.msra.mxu0 0.0
      %512 = vmatprep.subr.mxu0 0.0
      %513 = vmatpush1.msra.mxu0 0.0
      %514 = vmatprep.subr.mxu0 0.0
      %515 = vmatpush1.msra.mxu0 0.0
      %516 = vmatprep.subr.mxu0 0.0
      %517 = vmatpush1.msra.mxu0 0.0
      %518 = vmatprep.subr.mxu0 0.0
      %519 = vmatpush1.msra.mxu0 0.0
      %520 = vmatprep.subr.mxu0 0.0
      %521 = vmatpush1.msra.mxu0 0.0
      %522 = vmatprep.subr.mxu0 0.0
      %523 = vmatpush1.msra.mxu0 0.0
      %524 = vmatprep.subr.mxu0 0.0
      %525 = vmatpush1.msra.mxu0 0.0
      %526 = vmatprep.subr.mxu0 0.0
      %527 = vmatpush1.msra.mxu0 0.0
      %528 = vmatprep.subr.mxu0 0.0
      %529 = vmatpush1.msra.mxu0 0.0
      %530 = vmatprep.subr.mxu0 0.0
      %531 = vmatpush1.msra.mxu0 0.0
      %532 = vmatprep.subr.mxu0 0.0
      %533 = vmatpush1.msra.mxu0 0.0
      %534 = vmatprep.subr.mxu0 0.0
      %535 = vmatpush1.msra.mxu0 0.0
      %536 = vmatprep.subr.mxu0 0.0
      %537 = vmatpush1.msra.mxu0 0.0
      %538 = vmatprep.subr.mxu0 0.0
      %539 = vmatpush1.msra.mxu0 0.0
      %540 = vmatprep.subr.mxu0 0.0
      %541 = vmatpush1.msra.mxu0 0.0
      %542 = vmatprep.subr.mxu0 0.0
      %543 = vmatpush1.msra.mxu0 0.0
      %544 = vmatprep.subr.mxu0 0.0
      %545 = vmatpush1.msra.mxu0 0.0
      %546 = vmatprep.subr.mxu0 0.0
      %547 = vmatpush1.msra.mxu0 0.0
      %548 = vmatprep.subr.mxu0 0.0
      %549 = vmatpush1.msra.mxu0 0.0
      %550 = vmatprep.subr.mxu0 0.0
      %551 = vmatpush1.msra.mxu0 0.0
      %552 = vmatprep.subr.mxu0 0.0
      %553 = vmatpush1.msra.mxu0 0.0
      %554 = vmatprep.subr.mxu0 0.0
      %555 = vmatpush1.msra.mxu0 0.0
      %556 = vmatprep.subr.mxu0 0.0
      %557 = vmatpush1.msra.mxu0 0.0
      %558 = vmatprep.subr.mxu0 0.0
      %559 = vmatpush1.msra.mxu0 0.0
      %560 = vmatprep.subr.mxu0 0.0
      %561 = vmatpush1.msra.mxu0 0.0
      %562 = vmatprep.subr.mxu0 0.0
      %563 = vmatpush1.msra.mxu0 0.0
      %564 = vmatprep.subr.mxu0 0.0
      %565 = vmatpush1.msra.mxu0 0.0
      %566 = vmatprep.subr.mxu0 0.0
      %567 = vmatpush1.msra.mxu0 0.0
      %568 = vmatprep.subr.mxu0 0.0
      %569 = vmatpush1.msra.mxu0 0.0
      %570 = vmatprep.mubr.f32.mxu0 0.0
      %571 = vmatmul.mubr.f32.gmra.mrb[0].mxu0 %v504
      %v572 = vpop.f32.mrb[0].mxu0
      %v573 = vadd.f32 0.0, %v572
      %v574 = vpop.f32.mrb[0].mxu0
      %575 = vdwg.mxu0
      %v577 = vsel %vm238, %v497, 0
      %579 = vmatprep.subr.mxu0 0.0
      %580 = vmatpush1.msra.mxu0 %v498
      %581 = vmatprep.subr.mxu0 0.0
      %582 = vmatpush1.msra.mxu0 %v499
      %583 = vmatprep.subr.mxu0 0.0
      %584 = vmatpush1.msra.mxu0 0.0
      %585 = vmatprep.subr.mxu0 0.0
      %586 = vmatpush1.msra.mxu0 0.0
      %587 = vmatprep.subr.mxu0 0.0
      %588 = vmatpush1.msra.mxu0 0.0
      %589 = vmatprep.subr.mxu0 0.0
      %590 = vmatpush1.msra.mxu0 0.0
      %591 = vmatprep.subr.mxu0 0.0
      %592 = vmatpush1.msra.mxu0 0.0
      %593 = vmatprep.subr.mxu0 0.0
      %594 = vmatpush1.msra.mxu0 0.0
      %595 = vmatprep.subr.mxu0 0.0
      %596 = vmatpush1.msra.mxu0 0.0
      %597 = vmatprep.subr.mxu0 0.0
      %598 = vmatpush1.msra.mxu0 0.0
      %599 = vmatprep.subr.mxu0 0.0
      %600 = vmatpush1.msra.mxu0 0.0
      %601 = vmatprep.subr.mxu0 0.0
      %602 = vmatpush1.msra.mxu0 0.0
      %603 = vmatprep.subr.mxu0 0.0
      %604 = vmatpush1.msra.mxu0 0.0
      %605 = vmatprep.subr.mxu0 0.0
      %606 = vmatpush1.msra.mxu0 0.0
      %607 = vmatprep.subr.mxu0 0.0
      %608 = vmatpush1.msra.mxu0 0.0
      %609 = vmatprep.subr.mxu0 0.0
      %610 = vmatpush1.msra.mxu0 0.0
      %611 = vmatprep.subr.mxu0 0.0
      %612 = vmatpush1.msra.mxu0 0.0
      %613 = vmatprep.subr.mxu0 0.0
      %614 = vmatpush1.msra.mxu0 0.0
      %615 = vmatprep.subr.mxu0 0.0
      %616 = vmatpush1.msra.mxu0 0.0
      %617 = vmatprep.subr.mxu0 0.0
      %618 = vmatpush1.msra.mxu0 0.0
      %619 = vmatprep.subr.mxu0 0.0
      %620 = vmatpush1.msra.mxu0 0.0
      %621 = vmatprep.subr.mxu0 0.0
      %622 = vmatpush1.msra.mxu0 0.0
      %623 = vmatprep.subr.mxu0 0.0
      %624 = vmatpush1.msra.mxu0 0.0
      %625 = vmatprep.subr.mxu0 0.0
      %626 = vmatpush1.msra.mxu0 0.0
      %627 = vmatprep.subr.mxu0 0.0
      %628 = vmatpush1.msra.mxu0 0.0
      %629 = vmatprep.subr.mxu0 0.0
      %630 = vmatpush1.msra.mxu0 0.0
      %631 = vmatprep.subr.mxu0 0.0
      %632 = vmatpush1.msra.mxu0 0.0
      %633 = vmatprep.subr.mxu0 0.0
      %634 = vmatpush1.msra.mxu0 0.0
      %635 = vmatprep.subr.mxu0 0.0
      %636 = vmatpush1.msra.mxu0 0.0
      %637 = vmatprep.subr.mxu0 0.0
      %638 = vmatpush1.msra.mxu0 0.0
      %639 = vmatprep.subr.mxu0 0.0
      %640 = vmatpush1.msra.mxu0 0.0
      %641 = vmatprep.subr.mxu0 0.0
      %642 = vmatpush1.msra.mxu0 0.0
      %643 = vmatprep.mubr.f32.mxu0 0.0
      %644 = vmatmul.mubr.f32.gmra.mrb[0].mxu0 %v577
      %v645 = vpop.f32.mrb[0].mxu0
      %v646 = vadd.f32 %v573, %v645
      %v647 = vpop.f32.mrb[0].mxu0
      %648 = vdwg.mxu0
      %v649 = vld [vmem:[%s11] sm:$0xff]
      %v650 = vld [vmem:[%s14] sm:$0x7f]
      %vm651 = vcmask 56320
      %v653 = vsel %vm651, %v649, 0
      %vm655 = vcmask 1046528
      %v657 = vsel %vm655, %v650, 0
      %659 = vmatprep.subr.mxu0 0.0
      %660 = vmatpush1.msra.mxu0 %v657
      %661 = vmatprep.subr.mxu0 0.0
      %662 = vmatpush1.msra.mxu0 0.0
      %663 = vmatprep.subr.mxu0 0.0
      %664 = vmatpush1.msra.mxu0 0.0
      %665 = vmatprep.subr.mxu0 0.0
      %666 = vmatpush1.msra.mxu0 0.0
      %667 = vmatprep.subr.mxu0 0.0
      %668 = vmatpush1.msra.mxu0 0.0
      %669 = vmatprep.subr.mxu0 0.0
      %670 = vmatpush1.msra.mxu0 0.0
      %671 = vmatprep.subr.mxu0 0.0
      %672 = vmatpush1.msra.mxu0 0.0
      %673 = vmatprep.subr.mxu0 0.0
      %674 = vmatpush1.msra.mxu0 0.0
      %675 = vmatprep.subr.mxu0 0.0
      %676 = vmatpush1.msra.mxu0 0.0
      %677 = vmatprep.subr.mxu0 0.0
      %678 = vmatpush1.msra.mxu0 0.0
      %679 = vmatprep.subr.mxu0 0.0
      %680 = vmatpush1.msra.mxu0 0.0
      %681 = vmatprep.subr.mxu0 0.0
      %682 = vmatpush1.msra.mxu0 0.0
      %683 = vmatprep.subr.mxu0 0.0
      %684 = vmatpush1.msra.mxu0 0.0
      %685 = vmatprep.subr.mxu0 0.0
      %686 = vmatpush1.msra.mxu0 0.0
      %687 = vmatprep.subr.mxu0 0.0
      %688 = vmatpush1.msra.mxu0 0.0
      %689 = vmatprep.subr.mxu0 0.0
      %690 = vmatpush1.msra.mxu0 0.0
      %691 = vmatprep.subr.mxu0 0.0
      %692 = vmatpush1.msra.mxu0 0.0
      %693 = vmatprep.subr.mxu0 0.0
      %694 = vmatpush1.msra.mxu0 0.0
      %695 = vmatprep.subr.mxu0 0.0
      %696 = vmatpush1.msra.mxu0 0.0
      %697 = vmatprep.subr.mxu0 0.0
      %698 = vmatpush1.msra.mxu0 0.0
      %699 = vmatprep.subr.mxu0 0.0
      %700 = vmatpush1.msra.mxu0 0.0
      %701 = vmatprep.subr.mxu0 0.0
      %702 = vmatpush1.msra.mxu0 0.0
      %703 = vmatprep.subr.mxu0 0.0
      %704 = vmatpush1.msra.mxu0 0.0
      %705 = vmatprep.subr.mxu0 0.0
      %706 = vmatpush1.msra.mxu0 0.0
      %707 = vmatprep.subr.mxu0 0.0
      %708 = vmatpush1.msra.mxu0 0.0
      %709 = vmatprep.subr.mxu0 0.0
      %710 = vmatpush1.msra.mxu0 0.0
      %711 = vmatprep.subr.mxu0 0.0
      %712 = vmatpush1.msra.mxu0 0.0
      %713 = vmatprep.subr.mxu0 0.0
      %714 = vmatpush1.msra.mxu0 0.0
      %715 = vmatprep.subr.mxu0 0.0
      %716 = vmatpush1.msra.mxu0 0.0
      %717 = vmatprep.subr.mxu0 0.0
      %718 = vmatpush1.msra.mxu0 0.0
      %719 = vmatprep.subr.mxu0 0.0
      %720 = vmatpush1.msra.mxu0 0.0
      %721 = vmatprep.subr.mxu0 0.0
      %722 = vmatpush1.msra.mxu0 0.0
      %723 = vmatprep.mubr.f32.mxu0 0.0
      %724 = vmatmul.mubr.f32.gmra.mrb[0].mxu0 %v653
      %v725 = vpop.f32.mrb[0].mxu0
      %v726 = vadd.f32 0.0, %v725
      %v727 = vpop.f32.mrb[0].mxu0
      %728 = vdwg.mxu0
      %v729 = vadd.f32 %v646, %v726
      %v730 = vld [vmem:[%s15] sm:$0x1]
      %v732 = vlaneseq
      %v733 = vshrl.u32 %v732, 7
      %v734 = vsub.s32 0, %v733
      %v735 = vrot.slane %v730, %v734
      %v737 = vadd.f32 %v729, %v735
      %v738 = vmax.f32 %v737, 0.0
      %v739 = vld [vmem:[%s16] sm:$0xff]
      %v740 = vld [vmem:[%s16 + $0x8] sm:$0xff]
      %v741 = vld [vmem:[%s16 + $0x10] sm:$0xff]
      %v742 = vld [vmem:[%s16 + $0x18] sm:$0xff]
      %v743 = vld [vmem:[%s17] sm:$0x1]
      %v745 = vlaneseq
      %v746 = vshrl.u32 %v745, 7
      %v747 = vsub.s32 0, %v746
      %v748 = vrot.slane %v743, %v747
      %v751 = vsel %vm333, %v738, 0
      %753 = vmatprep.subr.mxu0 0.0
      %754 = vmatpush1.msra.mxu0 %v739
      %755 = vmatprep.subr.mxu0 0.0
      %756 = vmatpush1.msra.mxu0 %v740
      %757 = vmatprep.subr.mxu0 0.0
      %758 = vmatpush1.msra.mxu0 %v741
      %759 = vmatprep.subr.mxu0 0.0
      %760 = vmatpush1.msra.mxu0 %v742
      %761 = vmatprep.subr.mxu0 0.0
      %762 = vmatpush1.msra.mxu0 0.0
      %763 = vmatprep.subr.mxu0 0.0
      %764 = vmatpush1.msra.mxu0 0.0
      %765 = vmatprep.subr.mxu0 0.0
      %766 = vmatpush1.msra.mxu0 0.0
      %767 = vmatprep.subr.mxu0 0.0
      %768 = vmatpush1.msra.mxu0 0.0
      %769 = vmatprep.subr.mxu0 0.0
      %770 = vmatpush1.msra.mxu0 0.0
      %771 = vmatprep.subr.mxu0 0.0
      %772 = vmatpush1.msra.mxu0 0.0
      %773 = vmatprep.subr.mxu0 0.0
      %774 = vmatpush1.msra.mxu0 0.0
      %775 = vmatprep.subr.mxu0 0.0
      %776 = vmatpush1.msra.mxu0 0.0
      %777 = vmatprep.subr.mxu0 0.0
      %778 = vmatpush1.msra.mxu0 0.0
      %779 = vmatprep.subr.mxu0 0.0
      %780 = vmatpush1.msra.mxu0 0.0
      %781 = vmatprep.subr.mxu0 0.0
      %782 = vmatpush1.msra.mxu0 0.0
      %783 = vmatprep.subr.mxu0 0.0
      %784 = vmatpush1.msra.mxu0 0.0
      %785 = vmatprep.subr.mxu0 0.0
      %786 = vmatpush1.msra.mxu0 0.0
      %787 = vmatprep.subr.mxu0 0.0
      %788 = vmatpush1.msra.mxu0 0.0
      %789 = vmatprep.subr.mxu0 0.0
      %790 = vmatpush1.msra.mxu0 0.0
      %791 = vmatprep.subr.mxu0 0.0
      %792 = vmatpush1.msra.mxu0 0.0
      %793 = vmatprep.subr.mxu0 0.0
      %794 = vmatpush1.msra.mxu0 0.0
      %795 = vmatprep.subr.mxu0 0.0
      %796 = vmatpush1.msra.mxu0 0.0
      %797 = vmatprep.subr.mxu0 0.0
      %798 = vmatpush1.msra.mxu0 0.0
      %799 = vmatprep.subr.mxu0 0.0
      %800 = vmatpush1.msra.mxu0 0.0
      %801 = vmatprep.subr.mxu0 0.0
      %802 = vmatpush1.msra.mxu0 0.0
      %803 = vmatprep.subr.mxu0 0.0
      %804 = vmatpush1.msra.mxu0 0.0
      %805 = vmatprep.subr.mxu0 0.0
      %806 = vmatpush1.msra.mxu0 0.0
      %807 = vmatprep.subr.mxu0 0.0
      %808 = vmatpush1.msra.mxu0 0.0
      %809 = vmatprep.subr.mxu0 0.0
      %810 = vmatpush1.msra.mxu0 0.0
      %811 = vmatprep.subr.mxu0 0.0
      %812 = vmatpush1.msra.mxu0 0.0
      %813 = vmatprep.subr.mxu0 0.0
      %814 = vmatpush1.msra.mxu0 0.0
      %815 = vmatprep.subr.mxu0 0.0
      %816 = vmatpush1.msra.mxu0 0.0
      %817 = vmatprep.mubr.f32.mxu0 0.0
      %818 = vmatmul.mubr.f32.gmra.mrb[0].mxu0 %v751
      %v819 = vpop.f32.mrb[0].mxu0
      %v820 = vadd.f32 %v748, %v819
      %v821 = vpop.f32.mrb[0].mxu0
      %822 = vdwg.mxu0
      %823 = vst.msk [vmem:[%s20] sm:$0xff] %vm238, %v820
    $region81: #{rfm_block_forward.3} parent=1 // pred_fallthru
      _
    // Predicated region
    $region82: #{rfm_block_forward.3} parent=1 // pred_check
      _
    $region83: #{rfm_block_forward.3} parent=1 // pred_check_branch
      %825 = sbr.rel (0) target = $region85
    $region84: #{rfm_block_forward.3} parent=1 // pred_region
      %s827 = ssub.s32 128, 128
      %828 = vsyncadd [#allocation3], %s827
      %s830 = sshll.u32 [#allocation2], 4
      %s831 = int_to_ptr.vmem [resolvable:$true] %s830
      %833 = dma.vmem_to_hbm [thread:$0]  %s831, 128, %s18, [#allocation3]
    $region85: #{rfm_block_forward.3} parent=1 // pred_fallthru
      _
    // Predicated region
    $region86: #{rfm_block_forward.3} parent=1 // pred_check
      _
    $region87: #{rfm_block_forward.3} parent=1 // pred_check_branch
      %835 = sbr.rel (0) target = $region89
    $region88: #{rfm_block_forward.3} parent=1 // pred_region
      %s837 = ssub.s32 128, 128
      %838 = vsyncadd [#allocation5], %s837
      %s840 = sshll.u32 [#allocation4], 4
      %s841 = int_to_ptr.vmem [resolvable:$true] %s840
      %843 = dma.vmem_to_hbm [thread:$0]  %s841, 128, %s19, [#allocation5]
    $region89: #{rfm_block_forward.3} parent=1 // pred_fallthru
      _
    // Predicated region
    $region90: #{rfm_block_forward.3} parent=1 // pred_check
      _
    $region91: #{rfm_block_forward.3} parent=1 // pred_check_branch
      %845 = sbr.rel (0) target = $region93
    $region92: #{rfm_block_forward.3} parent=1 // pred_region
      _
    $region93: #{rfm_block_forward.3} parent=1 // pred_fallthru
      _
    // Predicated region
    $region94: #{rfm_block_forward.3} parent=1 // pred_check
      _
    $region95: #{rfm_block_forward.3} parent=1 // pred_check_branch
      %847 = sbr.rel (0) target = $region97
    $region96: #{rfm_block_forward.3} parent=1 // pred_region
      %848 = dma.done [#allocation3], 128
    $region97: #{rfm_block_forward.3} parent=1 // pred_fallthru
      _
    // Predicated region
    $region98: #{rfm_block_forward.3} parent=1 // pred_check
      _
    $region99: #{rfm_block_forward.3} parent=1 // pred_check_branch
      %850 = sbr.rel (0) target = $region101
    $region100: #{rfm_block_forward.3} parent=1 // pred_region
      %851 = dma.done [#allocation5], 128
    $region101: #{rfm_block_forward.3} parent=1 // pred_fallthru
      _
    // Predicated region
    $region102: #{rfm_block_forward.3} parent=1 // pred_check
      _
    $region103: #{rfm_block_forward.3} parent=1 // pred_check_branch
      %853 = sbr.rel (0) target = $region105
    $region104: #{rfm_block_forward.3} parent=1 // pred_region
      _
    $region105: #{rfm_block_forward.3} parent=1 // pred_fallthru
      _
    %854 = vsyncpa [#allocation3], 1
    %855 = vsyncpa [#allocation5], 1

</llo_original>
